<compile_context>
chip_gen: v7x
topology: tpu7x:2x2x1
jax: 0.10.0
libtpu: 0.0.40
codegen_flags: <defaults>
</compile_context>

<pallas_src>
import jax
import jax.numpy as jnp
from jax.experimental import pallas as pl
from jax.experimental.pallas import tpu as pltpu

OUT_PAD = 128  # lane-dense padded width for the scalar Q output (column 0 is real)


def _round_up(x, m):
    return (x + m - 1) // m * m


def critic_ddpg_kernel(sa_ref, w1_ref, b1_ref, w2_ref, b2_ref,
                       w3_ref, b3_ref, w4_ref, b4_ref, o_ref):
    # Layer 1 (concat already fused in wrapper): single K=sa_dim MXU push + ReLU.
    h = jnp.dot(sa_ref[...], w1_ref[...], preferred_element_type=jnp.float32)
    h = h + b1_ref[...]
    h = jnp.maximum(h, 0.0).astype(jnp.bfloat16)

    # Layer 2 + ReLU.
    h = jnp.dot(h, w2_ref[...], preferred_element_type=jnp.float32) + b2_ref[...]
    h = jnp.maximum(h, 0.0).astype(jnp.bfloat16)

    # Layer 3 + Hardswish: x * relu6(x + 3) / 6  (computed in f32).
    h = jnp.dot(h, w3_ref[...], preferred_element_type=jnp.float32) + b3_ref[...]
    h = (h * jnp.clip(h + 3.0, 0.0, 6.0) * (1.0 / 6.0)).astype(jnp.bfloat16)

    # Layer 4 -> lane-dense padded (tb, 128) output tile; Q lives in column 0.
    # bf16 store halves the dominant output HBM stream (wrapper casts back).
    q = jnp.dot(h, w4_ref[...], preferred_element_type=jnp.float32) + b4_ref[...]
    o_ref[...] = q.astype(o_ref.dtype)


def critic_ddpg_forward(state, action, params, *, block_batch=1024):
    """state: [B, state_dim], action: [B, action_dim] -> Q: [B, 1] (f32)."""
    (w1, b1), (w2, b2), (w3, b3), (w4, b4) = params
    B = state.shape[0]
    sa_dim = state.shape[1] + action.shape[1]
    mid_dim = w2.shape[0]

    # Fuse the concat in the wrapper: one input DMA stream, single K=sa_dim dot.
    sa = jnp.concatenate([state, action], axis=1).astype(jnp.bfloat16)

    # Adaptive batch tile:
    #   - large enough to amortize per-grid-step overhead (default up to 1024),
    #   - not larger than needed for small B (avoid computing padded garbage),
    #   - >=2 grid steps for large B so both v7x TensorCores get work
    #     (harmless on single-TC v5e/v6e).
    tb = min(block_batch, _round_up(pl.cdiv(B, 2), 256))
    b_pad = _round_up(B, tb)
    if b_pad != B:
        sa = jnp.pad(sa, ((0, b_pad - B), (0, 0)))

    batch_map = lambda i: (i, 0)   # tile along batch
    const_map = lambda i: (0, 0)   # weights/biases resident across grid steps

    flops = 2 * b_pad * mid_dim * (sa_dim + 2 * mid_dim + OUT_PAD)
    bytes_accessed = (
        b_pad * sa_dim * 2                                           # bf16 input
        + b_pad * OUT_PAD * 2                                        # bf16 output
        + (sa_dim * mid_dim + 2 * mid_dim * mid_dim
           + mid_dim * OUT_PAD) * 2                                  # bf16 weights
        + (3 * mid_dim + OUT_PAD) * 4                                # f32 biases
    )

    out = pl.pallas_call(
        critic_ddpg_kernel,
        out_shape=jax.ShapeDtypeStruct((b_pad, OUT_PAD), jnp.bfloat16),
        grid=(b_pad // tb,),
        in_specs=[
            pl.BlockSpec((tb, sa_dim), batch_map),
            pl.BlockSpec((sa_dim, mid_dim), const_map),
            pl.BlockSpec((1, mid_dim), const_map),
            pl.BlockSpec((mid_dim, mid_dim), const_map),
            pl.BlockSpec((1, mid_dim), const_map),
            pl.BlockSpec((mid_dim, mid_dim), const_map),
            pl.BlockSpec((1, mid_dim), const_map),
            pl.BlockSpec((mid_dim, OUT_PAD), const_map),
            pl.BlockSpec((1, OUT_PAD), const_map),
        ],
        out_specs=pl.BlockSpec((tb, OUT_PAD), batch_map),
        compiler_params=pltpu.CompilerParams(
            dimension_semantics=("parallel",),
            vmem_limit_bytes=32 * 1024 * 1024,
        ),
        cost_estimate=pl.CostEstimate(
            flops=flops, transcendentals=0, bytes_accessed=bytes_accessed),
    )(sa, w1, b1, w2, b2, w3, b3, w4, b4)

    return out[:B, :1].astype(jnp.float32)


def init_linear(key, in_dim, out_dim, w_dtype=jnp.bfloat16):
    """PyTorch nn.Linear default init: U(-1/sqrt(in), 1/sqrt(in)).
    Returns (W pre-transposed [in, out] in bf16, bias [1, out] in f32)."""
    kw, kb = jax.random.split(key)
    bound = 1.0 / jnp.sqrt(jnp.float32(in_dim))
    w = jax.random.uniform(kw, (in_dim, out_dim), jnp.float32, -bound, bound)
    b = jax.random.uniform(kb, (1, out_dim), jnp.float32, -bound, bound)
    return w.astype(w_dtype), b


def init_critic_params(key, state_dim, action_dim, mid_dim=256):
    k1, k2, k3, k4 = jax.random.split(key, 4)
    in_dim = state_dim + action_dim
    w1, b1 = init_linear(k1, in_dim, mid_dim)
    w2, b2 = init_linear(k2, mid_dim, mid_dim)
    w3, b3 = init_linear(k3, mid_dim, mid_dim)
    w4, b4 = init_linear(k4, mid_dim, 1)
    # Pad the final layer to a lane-dense 128-wide output (zero cols 1..127).
    w4p = jnp.zeros((mid_dim, OUT_PAD), jnp.bfloat16).at[:, :1].set(w4)
    b4p = jnp.zeros((1, OUT_PAD), jnp.float32).at[:, :1].set(b4)
    return (w1, b1), (w2, b2), (w3, b3), (w4p, b4p)


def reference_forward(state, action, params):
    """Plain-JAX reference mirroring the kernel's dtype flow (bf16 matmuls,
    f32 accumulation, bf16 final store). Note: true f32 PyTorch output differs
    by ~bf16 rounding (~1e-2 rel), acceptable for DDPG."""
    (w1, b1), (w2, b2), (w3, b3), (w4, b4) = params
    sa = jnp.concatenate([state, action], axis=1).astype(jnp.bfloat16)
    h = jnp.dot(sa, w1, preferred_element_type=jnp.float32) + b1
    h = jnp.maximum(h, 0.0).astype(jnp.bfloat16)
    h = jnp.dot(h, w2, preferred_element_type=jnp.float32) + b2
    h = jnp.maximum(h, 0.0).astype(jnp.bfloat16)
    h = jnp.dot(h, w3, preferred_element_type=jnp.float32) + b3
    h = (h * jnp.clip(h + 3.0, 0.0, 6.0) / 6.0).astype(jnp.bfloat16)
    q = jnp.dot(h, w4, preferred_element_type=jnp.float32) + b4
    return q.astype(jnp.bfloat16).astype(jnp.float32)[:, :1]


if __name__ == "__main__":
    key = jax.random.PRNGKey(0)
    k_state, k_action, k_params = jax.random.split(key, 3)

    batch = 8
    state_dim = 16
    action_dim = 8
    mid_dim = 256

    state = jax.random.normal(k_state, (batch, state_dim), jnp.float32)
    action = jax.random.normal(k_action, (batch, action_dim), jnp.float32)
    params = init_critic_params(k_params, state_dim, action_dim, mid_dim)

    q = jax.block_until_ready(critic_ddpg_forward(state, action, params))
    q_ref = reference_forward(state, action, params)
    assert q.shape == (batch, 1)
    assert jnp.allclose(q, q_ref, atol=2e-2, rtol=2e-2)

    # Second check: non-multiple batch exercises padding + a 2-step grid
    # (megacore path on v7x).
    batch2 = 300
    state2 = jax.random.normal(jax.random.PRNGKey(1), (batch2, state_dim), jnp.float32)
    action2 = jax.random.normal(jax.random.PRNGKey(2), (batch2, action_dim), jnp.float32)
    q2 = jax.block_until_ready(critic_ddpg_forward(state2, action2, params))
    q2_ref = reference_forward(state2, action2, params)
    assert q2.shape == (batch2, 1)
    assert jnp.allclose(q2, q2_ref, atol=2e-2, rtol=2e-2)

    print("KERNEL_OK")
</pallas_src>

<mosaic_0001>
module attributes {stable_mosaic.version = 11 : i64} {
  func.func @critic_ddpg_kernel(%arg0: i32, %arg1: memref<256x24xbf16, #tpu.memory_space<vmem>>, %arg2: memref<24x256xbf16, #tpu.memory_space<vmem>>, %arg3: memref<1x256xf32, #tpu.memory_space<vmem>>, %arg4: memref<256x256xbf16, #tpu.memory_space<vmem>>, %arg5: memref<1x256xf32, #tpu.memory_space<vmem>>, %arg6: memref<256x256xbf16, #tpu.memory_space<vmem>>, %arg7: memref<1x256xf32, #tpu.memory_space<vmem>>, %arg8: memref<256x128xbf16, #tpu.memory_space<vmem>>, %arg9: memref<1x128xf32, #tpu.memory_space<vmem>>, %arg10: memref<256x128xbf16, #tpu.memory_space<vmem>>) attributes {dimension_semantics = [#tpu.dimension_semantics<parallel>], iteration_bounds = array<i64: 1>, scalar_prefetch = 0 : i64, scratch_operands = 0 : i64, tpu.core_type = #tpu.core_type<tc>, window_params = [{transform_indices = @transform_0, window_bounds = array<i64: 256, 24>}, {pipeline_mode = #tpu.pipeline_mode<synchronous>, transform_indices = @transform_1, window_bounds = array<i64: 24, 256>}, {pipeline_mode = #tpu.pipeline_mode<synchronous>, transform_indices = @transform_2, window_bounds = array<i64: 1, 256>}, {pipeline_mode = #tpu.pipeline_mode<synchronous>, transform_indices = @transform_3, window_bounds = array<i64: 256, 256>}, {pipeline_mode = #tpu.pipeline_mode<synchronous>, transform_indices = @transform_4, window_bounds = array<i64: 1, 256>}, {pipeline_mode = #tpu.pipeline_mode<synchronous>, transform_indices = @transform_5, window_bounds = array<i64: 256, 256>}, {pipeline_mode = #tpu.pipeline_mode<synchronous>, transform_indices = @transform_6, window_bounds = array<i64: 1, 256>}, {pipeline_mode = #tpu.pipeline_mode<synchronous>, transform_indices = @transform_7, window_bounds = array<i64: 256, 128>}, {pipeline_mode = #tpu.pipeline_mode<synchronous>, transform_indices = @transform_8, window_bounds = array<i64: 1, 128>}, {transform_indices = @transform_9, window_bounds = array<i64: 256, 128>}]} {
    %c0 = arith.constant 0 : index
    %c0_0 = arith.constant 0 : index
    %0 = vector.load %arg1[%c0, %c0_0] : memref<256x24xbf16, #tpu.memory_space<vmem>>, vector<256x24xbf16>
    %c0_1 = arith.constant 0 : index
    %c0_2 = arith.constant 0 : index
    %1 = vector.load %arg2[%c0_1, %c0_2] : memref<24x256xbf16, #tpu.memory_space<vmem>>, vector<24x256xbf16>
    %cst = arith.constant dense<0.000000e+00> : vector<256x256xf32>
    %2 = tpu.matmul %0, %1, %cst {dimension_numbers = #tpu.dot_dimension_numbers<[1], [0], [0], [1], [0, 0, 1, 1], [], []>} : vector<256x24xbf16>, vector<24x256xbf16>, vector<256x256xf32> -> vector<256x256xf32>
    %c0_3 = arith.constant 0 : index
    %c0_4 = arith.constant 0 : index
    %3 = vector.load %arg3[%c0_3, %c0_4] : memref<1x256xf32, #tpu.memory_space<vmem>>, vector<1x256xf32>
    %4 = vector.broadcast %3 : vector<1x256xf32> to vector<256x256xf32>
    %5 = arith.addf %2, %4 : vector<256x256xf32>
    %cst_5 = arith.constant 0.000000e+00 : f32
    %6 = vector.broadcast %cst_5 : f32 to vector<256x256xf32>
    %7 = arith.maximumf %5, %6 : vector<256x256xf32>
    %8 = arith.truncf %7 : vector<256x256xf32> to vector<256x256xbf16>
    %c0_6 = arith.constant 0 : index
    %c0_7 = arith.constant 0 : index
    %9 = vector.load %arg4[%c0_6, %c0_7] : memref<256x256xbf16, #tpu.memory_space<vmem>>, vector<256x256xbf16>
    %cst_8 = arith.constant dense<0.000000e+00> : vector<256x256xf32>
    %10 = tpu.matmul %8, %9, %cst_8 {dimension_numbers = #tpu.dot_dimension_numbers<[1], [0], [0], [1], [0, 0, 1, 1], [], []>} : vector<256x256xbf16>, vector<256x256xbf16>, vector<256x256xf32> -> vector<256x256xf32>
    %c0_9 = arith.constant 0 : index
    %c0_10 = arith.constant 0 : index
    %11 = vector.load %arg5[%c0_9, %c0_10] : memref<1x256xf32, #tpu.memory_space<vmem>>, vector<1x256xf32>
    %12 = vector.broadcast %11 : vector<1x256xf32> to vector<256x256xf32>
    %13 = arith.addf %10, %12 : vector<256x256xf32>
    %cst_11 = arith.constant 0.000000e+00 : f32
    %14 = vector.broadcast %cst_11 : f32 to vector<256x256xf32>
    %15 = arith.maximumf %13, %14 : vector<256x256xf32>
    %16 = arith.truncf %15 : vector<256x256xf32> to vector<256x256xbf16>
    %c0_12 = arith.constant 0 : index
    %c0_13 = arith.constant 0 : index
    %17 = vector.load %arg6[%c0_12, %c0_13] : memref<256x256xbf16, #tpu.memory_space<vmem>>, vector<256x256xbf16>
    %cst_14 = arith.constant dense<0.000000e+00> : vector<256x256xf32>
    %18 = tpu.matmul %16, %17, %cst_14 {dimension_numbers = #tpu.dot_dimension_numbers<[1], [0], [0], [1], [0, 0, 1, 1], [], []>} : vector<256x256xbf16>, vector<256x256xbf16>, vector<256x256xf32> -> vector<256x256xf32>
    %c0_15 = arith.constant 0 : index
    %c0_16 = arith.constant 0 : index
    %19 = vector.load %arg7[%c0_15, %c0_16] : memref<1x256xf32, #tpu.memory_space<vmem>>, vector<1x256xf32>
    %20 = vector.broadcast %19 : vector<1x256xf32> to vector<256x256xf32>
    %21 = arith.addf %18, %20 : vector<256x256xf32>
    %cst_17 = arith.constant 3.000000e+00 : f32
    %22 = vector.broadcast %cst_17 : f32 to vector<256x256xf32>
    %23 = arith.addf %21, %22 : vector<256x256xf32>
    %cst_18 = arith.constant 0.000000e+00 : f32
    %cst_19 = arith.constant 6.000000e+00 : f32
    %24 = vector.broadcast %cst_18 : f32 to vector<256x256xf32>
    %25 = arith.maximumf %24, %23 : vector<256x256xf32>
    %26 = vector.broadcast %cst_19 : f32 to vector<256x256xf32>
    %27 = arith.minimumf %26, %25 : vector<256x256xf32>
    %28 = arith.mulf %21, %27 : vector<256x256xf32>
    %cst_20 = arith.constant 0.166666672 : f32
    %29 = vector.broadcast %cst_20 : f32 to vector<256x256xf32>
    %30 = arith.mulf %28, %29 : vector<256x256xf32>
    %31 = arith.truncf %30 : vector<256x256xf32> to vector<256x256xbf16>
    %c0_21 = arith.constant 0 : index
    %c0_22 = arith.constant 0 : index
    %32 = vector.load %arg8[%c0_21, %c0_22] : memref<256x128xbf16, #tpu.memory_space<vmem>>, vector<256x128xbf16>
    %cst_23 = arith.constant dense<0.000000e+00> : vector<256x128xf32>
    %33 = tpu.matmul %31, %32, %cst_23 {dimension_numbers = #tpu.dot_dimension_numbers<[1], [0], [0], [1], [0, 0, 1, 1], [], []>} : vector<256x256xbf16>, vector<256x128xbf16>, vector<256x128xf32> -> vector<256x128xf32>
    %c0_24 = arith.constant 0 : index
    %c0_25 = arith.constant 0 : index
    %34 = vector.load %arg9[%c0_24, %c0_25] : memref<1x128xf32, #tpu.memory_space<vmem>>, vector<1x128xf32>
    %35 = vector.broadcast %34 : vector<1x128xf32> to vector<256x128xf32>
    %36 = arith.addf %33, %35 : vector<256x128xf32>
    %37 = arith.truncf %36 : vector<256x128xf32> to vector<256x128xbf16>
    %c0_26 = arith.constant 0 : index
    %c0_27 = arith.constant 0 : index
    %38 = vector.load %arg10[%c0_26, %c0_27] : memref<256x128xbf16, #tpu.memory_space<vmem>>, vector<256x128xbf16>
    tpu.vector_store %arg10[%c0_26, %c0_27], %37 {strides = array<i32>} : memref<256x128xbf16, #tpu.memory_space<vmem>>, vector<256x128xbf16>,
    return
  }
  func.func @transform_0(%arg0: i32) -> (i32, i32) {
    %c0_i32 = arith.constant 0 : i32
    %c0_i32_0 = arith.constant 0 : i32
    return %arg0, %c0_i32 : i32, i32
  }
  func.func @transform_1(%arg0: i32) -> (i32, i32) {
    %c0_i32 = arith.constant 0 : i32
    %c0_i32_0 = arith.constant 0 : i32
    %c0_i32_1 = arith.constant 0 : i32
    return %c0_i32, %c0_i32_0 : i32, i32
  }
  func.func @transform_2(%arg0: i32) -> (i32, i32) {
    %c0_i32 = arith.constant 0 : i32
    %c0_i32_0 = arith.constant 0 : i32
    %c0_i32_1 = arith.constant 0 : i32
    return %c0_i32, %c0_i32_0 : i32, i32
  }
  func.func @transform_3(%arg0: i32) -> (i32, i32) {
    %c0_i32 = arith.constant 0 : i32
    %c0_i32_0 = arith.constant 0 : i32
    %c0_i32_1 = arith.constant 0 : i32
    return %c0_i32, %c0_i32_0 : i32, i32
  }
  func.func @transform_4(%arg0: i32) -> (i32, i32) {
    %c0_i32 = arith.constant 0 : i32
    %c0_i32_0 = arith.constant 0 : i32
    %c0_i32_1 = arith.constant 0 : i32
    return %c0_i32, %c0_i32_0 : i32, i32
  }
  func.func @transform_5(%arg0: i32) -> (i32, i32) {
    %c0_i32 = arith.constant 0 : i32
    %c0_i32_0 = arith.constant 0 : i32
    %c0_i32_1 = arith.constant 0 : i32
    return %c0_i32, %c0_i32_0 : i32, i32
  }
  func.func @transform_6(%arg0: i32) -> (i32, i32) {
    %c0_i32 = arith.constant 0 : i32
    %c0_i32_0 = arith.constant 0 : i32
    %c0_i32_1 = arith.constant 0 : i32
    return %c0_i32, %c0_i32_0 : i32, i32
  }
  func.func @transform_7(%arg0: i32) -> (i32, i32) {
    %c0_i32 = arith.constant 0 : i32
    %c0_i32_0 = arith.constant 0 : i32
    %c0_i32_1 = arith.constant 0 : i32
    return %c0_i32, %c0_i32_0 : i32, i32
  }
  func.func @transform_8(%arg0: i32) -> (i32, i32) {
    %c0_i32 = arith.constant 0 : i32
    %c0_i32_0 = arith.constant 0 : i32
    %c0_i32_1 = arith.constant 0 : i32
    return %c0_i32, %c0_i32_0 : i32, i32
  }
  func.func @transform_9(%arg0: i32) -> (i32, i32) {
    %c0_i32 = arith.constant 0 : i32
    %c0_i32_0 = arith.constant 0 : i32
    return %arg0, %c0_i32 : i32, i32
  }
}

</mosaic_0001>

<llo_original>
// kernel: tpu_custom_call.1
$region0: #{tpu_custom_call.1}
  #allocation0 [shape = 'u32[]', space=smem, size = 0x4, offset = 0x4, fixed_abs, tag = 'smem constant byte address 0x4 - core index']
  #allocation1 [shape = 'u32[144,128]{1,0:T(1,128)}', space=vmem, size = 0x12000, scoped, tag = 'internal scratch']
  %s0 = inlined_call_operand.vmem [shape: bf16[256,24], index: 0, kind: input, shape index: {}]
  %s1 = inlined_call_operand.vmem [shape: bf16[24,256], index: 1, kind: input, shape index: {}]
  %s2 = inlined_call_operand.vmem [shape: f32[1,256], index: 2, kind: input, shape index: {}]
  %s3 = inlined_call_operand.hbm [shape: bf16[256,256], index: 3, kind: input, shape index: {}]
  %s4 = inlined_call_operand.vmem [shape: f32[1,256], index: 4, kind: input, shape index: {}]
  %s5 = inlined_call_operand.hbm [shape: bf16[256,256], index: 5, kind: input, shape index: {}]
  %s6 = inlined_call_operand.vmem [shape: f32[1,256], index: 6, kind: input, shape index: {}]
  %s7 = inlined_call_operand.vmem [shape: bf16[256,128], index: 7, kind: input, shape index: {}]
  %s8 = inlined_call_operand.vmem [shape: f32[1,128], index: 8, kind: input, shape index: {}]
  %s9 = inlined_call_operand.hbm [shape: bf16[256,128], index: 9, kind: output, shape index: {}]
  %s10 = sld [smem:[#allocation0]]
  $region54: #{tpu_custom_call.1} parent=0
    _
  %s12 = ssub.s32 1, %s10
  %s13 = scalar_select 0, %s12, %s10
  $region1: #{tpu_custom_call.1} parent=0
    #allocation2 [shape = 'u8[131072]{0}', space=vmem, size = 0x20000, scoped, tag = 'input window, operand 3, single buffered']
    #allocation3 [shape = 's32[1]{0}', space=sflag, size = 0x4, scoped, tag = 'scoped memory for tpu_custom_call.1']
    #allocation4 [shape = 's32[1]{0}', space=sflag, size = 0x4, scoped, tag = 'scoped memory for tpu_custom_call.1']
    #allocation5 [shape = 'u8[131072]{0}', space=vmem, size = 0x20000, scoped, tag = 'input window, operand 5, single buffered']
    #allocation6 [shape = 's32[1]{0}', space=sflag, size = 0x4, scoped, tag = 'scoped memory for tpu_custom_call.1']
    #allocation7 [shape = 'u8[65536]{0}', space=vmem, size = 0x10000, scoped, tag = 'output window, operand 0, single buffered']
    %14 = vsyncpa [#allocation3], 0
    %15 = vsyncpa [#allocation6], 0
    %16 = vsyncpa [#allocation4], 0
    // Predicated region
    $region2: #{tpu_custom_call.1} parent=1 // pred_check
      _
    $region3: #{tpu_custom_call.1} parent=1 // pred_check_branch
      %18 = sbr.rel (0) target = $region5
    $region4: #{tpu_custom_call.1} parent=1 // pred_region
      _
    $region5: #{tpu_custom_call.1} parent=1 // pred_fallthru
      _
    // Predicated region
    $region6: #{tpu_custom_call.1} parent=1 // pred_check
      _
    $region7: #{tpu_custom_call.1} parent=1 // pred_check_branch
      %20 = sbr.rel (0) target = $region9
    $region8: #{tpu_custom_call.1} parent=1 // pred_region
      _
    $region9: #{tpu_custom_call.1} parent=1 // pred_fallthru
      _
    // Predicated region
    $region10: #{tpu_custom_call.1} parent=1 // pred_check
      _
    $region11: #{tpu_custom_call.1} parent=1 // pred_check_branch
      %22 = sbr.rel (0) target = $region13
    $region12: #{tpu_custom_call.1} parent=1 // pred_region
      _
    $region13: #{tpu_custom_call.1} parent=1 // pred_fallthru
      _
    // Predicated region
    $region14: #{tpu_custom_call.1} parent=1 // pred_check
      _
    $region15: #{tpu_custom_call.1} parent=1 // pred_check_branch
      %24 = sbr.rel (0) target = $region17
    $region16: #{tpu_custom_call.1} parent=1 // pred_region
      %s26 = ssub.s32 4096, 4096
      %27 = vsyncadd [#allocation3], %s26
      %s28 = sshll.u32 [#allocation2], 4
      %s29 = int_to_ptr.vmem [resolvable:$true] %s28
      %34 = dma.hbm_to_vmem [thread:$0]  %s3, 4096, %s29, [#allocation3], 128, 128, 8
    $region17: #{tpu_custom_call.1} parent=1 // pred_fallthru
      _
    // Predicated region
    $region18: #{tpu_custom_call.1} parent=1 // pred_check
      _
    $region19: #{tpu_custom_call.1} parent=1 // pred_check_branch
      %36 = sbr.rel (0) target = $region21
    $region20: #{tpu_custom_call.1} parent=1 // pred_region
      _
    $region21: #{tpu_custom_call.1} parent=1 // pred_fallthru
      _
    // Predicated region
    $region22: #{tpu_custom_call.1} parent=1 // pred_check
      _
    $region23: #{tpu_custom_call.1} parent=1 // pred_check_branch
      %38 = sbr.rel (0) target = $region25
    $region24: #{tpu_custom_call.1} parent=1 // pred_region
      %s40 = ssub.s32 4096, 4096
      %41 = vsyncadd [#allocation6], %s40
      %s42 = sshll.u32 [#allocation5], 4
      %s43 = int_to_ptr.vmem [resolvable:$true] %s42
      %48 = dma.hbm_to_vmem [thread:$0]  %s5, 4096, %s43, [#allocation6], 128, 128, 8
    $region25: #{tpu_custom_call.1} parent=1 // pred_fallthru
      _
    // Predicated region
    $region26: #{tpu_custom_call.1} parent=1 // pred_check
      _
    $region27: #{tpu_custom_call.1} parent=1 // pred_check_branch
      %50 = sbr.rel (0) target = $region29
    $region28: #{tpu_custom_call.1} parent=1 // pred_region
      _
    $region29: #{tpu_custom_call.1} parent=1 // pred_fallthru
      _
    // Predicated region
    $region30: #{tpu_custom_call.1} parent=1 // pred_check
      _
    $region31: #{tpu_custom_call.1} parent=1 // pred_check_branch
      %52 = sbr.rel (0) target = $region33
    $region32: #{tpu_custom_call.1} parent=1 // pred_region
      _
    $region33: #{tpu_custom_call.1} parent=1 // pred_fallthru
      _
    // Predicated region
    $region34: #{tpu_custom_call.1} parent=1 // pred_check
      _
    $region35: #{tpu_custom_call.1} parent=1 // pred_check_branch
      %54 = sbr.rel (0) target = $region37
    $region36: #{tpu_custom_call.1} parent=1 // pred_region
      _
    $region37: #{tpu_custom_call.1} parent=1 // pred_fallthru
      _
    // Predicated region
    $region38: #{tpu_custom_call.1} parent=1 // pred_check
      _
    $region39: #{tpu_custom_call.1} parent=1 // pred_check_branch
      %56 = sbr.rel (0) target = $region41
    $region40: #{tpu_custom_call.1} parent=1 // pred_region
      %57 = dma.done [#allocation3], 4096
    $region41: #{tpu_custom_call.1} parent=1 // pred_fallthru
      _
    // Predicated region
    $region42: #{tpu_custom_call.1} parent=1 // pred_check
      _
    $region43: #{tpu_custom_call.1} parent=1 // pred_check_branch
      %59 = sbr.rel (0) target = $region45
    $region44: #{tpu_custom_call.1} parent=1 // pred_region
      %60 = dma.done [#allocation6], 4096
    $region45: #{tpu_custom_call.1} parent=1 // pred_fallthru
      _
    %v62 = vld [vmem:[%s0] sm:$0xf]
    %v63 = vld [vmem:[%s0 + $0x4] sm:$0xf]
    %v64 = vld [vmem:[%s0 + $0x8] sm:$0xf]
    %v65 = vld [vmem:[%s0 + $0xc] sm:$0xf]
    %v66 = vld [vmem:[%s0 + $0x10] sm:$0xf]
    %v67 = vld [vmem:[%s0 + $0x14] sm:$0xf]
    %v68 = vld [vmem:[%s0 + $0x18] sm:$0xf]
    %v69 = vld [vmem:[%s0 + $0x1c] sm:$0xf]
    %v70 = vld [vmem:[%s0 + $0x20] sm:$0xf]
    %v71 = vld [vmem:[%s0 + $0x24] sm:$0xf]
    %v72 = vld [vmem:[%s0 + $0x28] sm:$0xf]
    %v73 = vld [vmem:[%s0 + $0x2c] sm:$0xf]
    %v74 = vld [vmem:[%s0 + $0x30] sm:$0xf]
    %v75 = vld [vmem:[%s0 + $0x34] sm:$0xf]
    %v76 = vld [vmem:[%s0 + $0x38] sm:$0xf]
    %v77 = vld [vmem:[%s0 + $0x3c] sm:$0xf]
    %v78 = vld [vmem:[%s0 + $0x40] sm:$0xf]
    %v79 = vld [vmem:[%s0 + $0x44] sm:$0xf]
    %v80 = vld [vmem:[%s0 + $0x48] sm:$0xf]
    %v81 = vld [vmem:[%s0 + $0x4c] sm:$0xf]
    %v82 = vld [vmem:[%s0 + $0x50] sm:$0xf]
    %v83 = vld [vmem:[%s0 + $0x54] sm:$0xf]
    %v84 = vld [vmem:[%s0 + $0x58] sm:$0xf]
    %v85 = vld [vmem:[%s0 + $0x5c] sm:$0xf]
    %v86 = vld [vmem:[%s0 + $0x60] sm:$0xf]
    %v87 = vld [vmem:[%s0 + $0x64] sm:$0xf]
    %v88 = vld [vmem:[%s0 + $0x68] sm:$0xf]
    %v89 = vld [vmem:[%s0 + $0x6c] sm:$0xf]
    %v90 = vld [vmem:[%s0 + $0x70] sm:$0xf]
    %v91 = vld [vmem:[%s0 + $0x74] sm:$0xf]
    %v92 = vld [vmem:[%s0 + $0x78] sm:$0xf]
    %v93 = vld [vmem:[%s0 + $0x7c] sm:$0xf]
    %v94 = vld [vmem:[%s1] sm:$0xff]
    %v95 = vld [vmem:[%s1 + $0x8] sm:$0xff]
    %v96 = vld [vmem:[%s1 + $0x10] sm:$0xff]
    %v97 = vld [vmem:[%s2] sm:$0x3]
    %v99 = vlaneseq
    %v100 = vshrl.u32 %v99, 7
    %v101 = vsub.s32 0, %v100
    %v102 = vrot.slane %v97, %v101
    %v103 = vlaneseq
    %v104 = vshrl.u32 %v103, 7
    %v105 = vsub.s32 1, %v104
    %v106 = vrot.slane %v97, %v105
    %v141 = vunpack.c.l.b16 %v62
    %v142 = vunpack.c.l.b16 %v63
    %v143 = vunpack.c.l.b16 %v64
    %v144 = vunpack.c.l.b16 %v65
    %v145 = vunpack.c.l.b16 %v66
    %v146 = vunpack.c.l.b16 %v67
    %v147 = vunpack.c.l.b16 %v68
    %v148 = vunpack.c.l.b16 %v69
    %v149 = vunpack.c.l.b16 %v70
    %v150 = vunpack.c.l.b16 %v71
    %v151 = vunpack.c.l.b16 %v72
    %v152 = vunpack.c.l.b16 %v73
    %v153 = vunpack.c.l.b16 %v74
    %v154 = vunpack.c.l.b16 %v75
    %v155 = vunpack.c.l.b16 %v76
    %v156 = vunpack.c.l.b16 %v77
    %v157 = vunpack.c.l.b16 %v78
    %v158 = vunpack.c.l.b16 %v79
    %v159 = vunpack.c.l.b16 %v80
    %v160 = vunpack.c.l.b16 %v81
    %v161 = vunpack.c.l.b16 %v82
    %v162 = vunpack.c.l.b16 %v83
    %v163 = vunpack.c.l.b16 %v84
    %v164 = vunpack.c.l.b16 %v85
    %v165 = vunpack.c.l.b16 %v86
    %v166 = vunpack.c.l.b16 %v87
    %v167 = vunpack.c.l.b16 %v88
    %v168 = vunpack.c.l.b16 %v89
    %v169 = vunpack.c.l.b16 %v90
    %v170 = vunpack.c.l.b16 %v91
    %v171 = vunpack.c.l.b16 %v92
    %v172 = vunpack.c.l.b16 %v93
    %v173 = vpack.c.b16 %v142, %v141
    %v174 = vpack.c.b16 %v144, %v143
    %v175 = vpack.c.b16 %v146, %v145
    %v176 = vpack.c.b16 %v148, %v147
    %v177 = vpack.c.b16 %v150, %v149
    %v178 = vpack.c.b16 %v152, %v151
    %v179 = vpack.c.b16 %v154, %v153
    %v180 = vpack.c.b16 %v156, %v155
    %v181 = vpack.c.b16 %v158, %v157
    %v182 = vpack.c.b16 %v160, %v159
    %v183 = vpack.c.b16 %v162, %v161
    %v184 = vpack.c.b16 %v164, %v163
    %v185 = vpack.c.b16 %v166, %v165
    %v186 = vpack.c.b16 %v168, %v167
    %v187 = vpack.c.b16 %v170, %v169
    %v188 = vpack.c.b16 %v172, %v171
    %v192 = vunpack.c.l.b16 %v94
    %v193 = vunpack.c.h.b16 %v94
    %v194 = vunpack.c.l.b16 %v95
    %v195 = vunpack.c.h.b16 %v95
    %v196 = vunpack.c.l.b16 %v96
    %v197 = vunpack.c.h.b16 %v96
    %v198 = vpack.c.b16 %v194, %v192
    %v199 = vpack.c.b16 %v195, %v193
    %v200 = vpack.c.b16 %v196, %v196
    %v201 = vpack.c.b16 %v197, %v197
    %vm204 = vcmask 195584
    %v206 = vsel %vm204, %v173, 0
    %v209 = vsel %vm204, %v174, 0
    %v212 = vsel %vm204, %v175, 0
    %v215 = vsel %vm204, %v176, 0
    %v218 = vsel %vm204, %v177, 0
    %v221 = vsel %vm204, %v178, 0
    %v224 = vsel %vm204, %v179, 0
    %v227 = vsel %vm204, %v180, 0
    %v230 = vsel %vm204, %v181, 0
    %v233 = vsel %vm204, %v182, 0
    %v236 = vsel %vm204, %v183, 0
    %v239 = vsel %vm204, %v184, 0
    %v242 = vsel %vm204, %v185, 0
    %v245 = vsel %vm204, %v186, 0
    %v248 = vsel %vm204, %v187, 0
    %v251 = vsel %vm204, %v188, 0
    %vm253 = vcmask 1043456
    %v255 = vsel %vm253, %v200, 0
    %v258 = vsel %vm253, %v201, 0
    %260 = vmatprep.subr.bf16.mxu0 %v199
    %261 = vmatpush1.bf16.msra.mxu0 %v198
    %262 = vmatprep.subr.bf16.mxu0 %v258
    %263 = vmatpush1.bf16.msra.mxu0 %v255
    %264 = vmatprep.subr.bf16.mxu0 0
    %265 = vmatpush1.bf16.msra.mxu0 0
    %266 = vmatprep.subr.bf16.mxu0 0
    %267 = vmatpush1.bf16.msra.mxu0 0
    %268 = vmatprep.subr.bf16.mxu0 0
    %269 = vmatpush1.bf16.msra.mxu0 0
    %270 = vmatprep.subr.bf16.mxu0 0
    %271 = vmatpush1.bf16.msra.mxu0 0
    %272 = vmatprep.subr.bf16.mxu0 0
    %273 = vmatpush1.bf16.msra.mxu0 0
    %274 = vmatprep.subr.bf16.mxu0 0
    %275 = vmatpush1.bf16.msra.mxu0 0
    %276 = vmatprep.subr.bf16.mxu0 0
    %277 = vmatpush1.bf16.msra.mxu0 0
    %278 = vmatprep.subr.bf16.mxu0 0
    %279 = vmatpush1.bf16.msra.mxu0 0
    %280 = vmatprep.subr.bf16.mxu0 0
    %281 = vmatpush1.bf16.msra.mxu0 0
    %282 = vmatprep.subr.bf16.mxu0 0
    %283 = vmatpush1.bf16.msra.mxu0 0
    %284 = vmatprep.subr.bf16.mxu0 0
    %285 = vmatpush1.bf16.msra.mxu0 0
    %286 = vmatprep.subr.bf16.mxu0 0
    %287 = vmatpush1.bf16.msra.mxu0 0
    %288 = vmatprep.subr.bf16.mxu0 0
    %289 = vmatpush1.bf16.msra.mxu0 0
    %290 = vmatprep.subr.bf16.mxu0 0
    %291 = vmatpush1.bf16.msra.mxu0 0
    %292 = vmatprep.mubr.bf16.mxu0 0
    %293 = vmatmul.mubr.bf16.gmra.mrb[0].mxu0 %v206
    %v294 = vpop.f32.mrb[0].mxu0
    %v295 = vadd.f32 %v102, %v294
    %v296 = vpop.f32.mrb[0].mxu0
    %v297 = vadd.f32 %v106, %v296
    %v298 = vpop.f32.mrb[0].mxu0
    %v299 = vadd.f32 %v102, %v298
    %v300 = vpop.f32.mrb[0].mxu0
    %v301 = vadd.f32 %v106, %v300
    %302 = vmatprep.mubr.bf16.mxu0 0
    %303 = vmatmul.mubr.bf16.gmra.mrb[0].mxu0 %v209
    %v304 = vpop.f32.mrb[0].mxu0
    %v305 = vadd.f32 %v102, %v304
    %v306 = vpop.f32.mrb[0].mxu0
    %v307 = vadd.f32 %v106, %v306
    %v308 = vpop.f32.mrb[0].mxu0
    %v309 = vadd.f32 %v102, %v308
    %v310 = vpop.f32.mrb[0].mxu0
    %v311 = vadd.f32 %v106, %v310
    %312 = vmatprep.mubr.bf16.mxu0 0
    %313 = vmatmul.mubr.bf16.gmra.mrb[0].mxu0 %v212
    %v314 = vpop.f32.mrb[0].mxu0
    %v315 = vadd.f32 %v102, %v314
    %v316 = vpop.f32.mrb[0].mxu0
    %v317 = vadd.f32 %v106, %v316
    %v318 = vpop.f32.mrb[0].mxu0
    %v319 = vadd.f32 %v102, %v318
    %v320 = vpop.f32.mrb[0].mxu0
    %v321 = vadd.f32 %v106, %v320
    %322 = vmatprep.mubr.bf16.mxu0 0
    %323 = vmatmul.mubr.bf16.gmra.mrb[0].mxu0 %v215
    %v324 = vpop.f32.mrb[0].mxu0
    %v325 = vadd.f32 %v102, %v324
    %v326 = vpop.f32.mrb[0].mxu0
    %v327 = vadd.f32 %v106, %v326
    %v328 = vpop.f32.mrb[0].mxu0
    %v329 = vadd.f32 %v102, %v328
    %v330 = vpop.f32.mrb[0].mxu0
    %v331 = vadd.f32 %v106, %v330
    %332 = vmatprep.mubr.bf16.mxu0 0
    %333 = vmatmul.mubr.bf16.gmra.mrb[0].mxu0 %v218
    %v334 = vpop.f32.mrb[0].mxu0
    %v335 = vadd.f32 %v102, %v334
    %v336 = vpop.f32.mrb[0].mxu0
    %v337 = vadd.f32 %v106, %v336
    %v338 = vpop.f32.mrb[0].mxu0
    %v339 = vadd.f32 %v102, %v338
    %v340 = vpop.f32.mrb[0].mxu0
    %v341 = vadd.f32 %v106, %v340
    %342 = vmatprep.mubr.bf16.mxu0 0
    %343 = vmatmul.mubr.bf16.gmra.mrb[0].mxu0 %v221
    %v344 = vpop.f32.mrb[0].mxu0
    %v345 = vadd.f32 %v102, %v344
    %v346 = vpop.f32.mrb[0].mxu0
    %v347 = vadd.f32 %v106, %v346
    %v348 = vpop.f32.mrb[0].mxu0
    %v349 = vadd.f32 %v102, %v348
    %v350 = vpop.f32.mrb[0].mxu0
    %v351 = vadd.f32 %v106, %v350
    %352 = vmatprep.mubr.bf16.mxu0 0
    %353 = vmatmul.mubr.bf16.gmra.mrb[0].mxu0 %v224
    %v354 = vpop.f32.mrb[0].mxu0
    %v355 = vadd.f32 %v102, %v354
    %v356 = vpop.f32.mrb[0].mxu0
    %v357 = vadd.f32 %v106, %v356
    %v358 = vpop.f32.mrb[0].mxu0
    %v359 = vadd.f32 %v102, %v358
    %v360 = vpop.f32.mrb[0].mxu0
    %v361 = vadd.f32 %v106, %v360
    %362 = vmatprep.mubr.bf16.mxu0 0
    %363 = vmatmul.mubr.bf16.gmra.mrb[0].mxu0 %v227
    %v364 = vpop.f32.mrb[0].mxu0
    %v365 = vadd.f32 %v102, %v364
    %v366 = vpop.f32.mrb[0].mxu0
    %v367 = vadd.f32 %v106, %v366
    %v368 = vpop.f32.mrb[0].mxu0
    %v369 = vadd.f32 %v102, %v368
    %v370 = vpop.f32.mrb[0].mxu0
    %v371 = vadd.f32 %v106, %v370
    %372 = vmatprep.mubr.bf16.mxu0 0
    %373 = vmatmul.mubr.bf16.gmra.mrb[0].mxu0 %v230
    %v374 = vpop.f32.mrb[0].mxu0
    %v375 = vadd.f32 %v102, %v374
    %v376 = vpop.f32.mrb[0].mxu0
    %v377 = vadd.f32 %v106, %v376
    %v378 = vpop.f32.mrb[0].mxu0
    %v379 = vadd.f32 %v102, %v378
    %v380 = vpop.f32.mrb[0].mxu0
    %v381 = vadd.f32 %v106, %v380
    %382 = vmatprep.mubr.bf16.mxu0 0
    %383 = vmatmul.mubr.bf16.gmra.mrb[0].mxu0 %v233
    %v384 = vpop.f32.mrb[0].mxu0
    %v385 = vadd.f32 %v102, %v384
    %v386 = vpop.f32.mrb[0].mxu0
    %v387 = vadd.f32 %v106, %v386
    %v388 = vpop.f32.mrb[0].mxu0
    %v389 = vadd.f32 %v102, %v388
    %v390 = vpop.f32.mrb[0].mxu0
    %v391 = vadd.f32 %v106, %v390
    %392 = vmatprep.mubr.bf16.mxu0 0
    %393 = vmatmul.mubr.bf16.gmra.mrb[0].mxu0 %v236
    %v394 = vpop.f32.mrb[0].mxu0
    %v395 = vadd.f32 %v102, %v394
    %v396 = vpop.f32.mrb[0].mxu0
    %v397 = vadd.f32 %v106, %v396
    %v398 = vpop.f32.mrb[0].mxu0
    %v399 = vadd.f32 %v102, %v398
    %v400 = vpop.f32.mrb[0].mxu0
    %v401 = vadd.f32 %v106, %v400
    %402 = vmatprep.mubr.bf16.mxu0 0
    %403 = vmatmul.mubr.bf16.gmra.mrb[0].mxu0 %v239
    %v404 = vpop.f32.mrb[0].mxu0
    %v405 = vadd.f32 %v102, %v404
    %v406 = vpop.f32.mrb[0].mxu0
    %v407 = vadd.f32 %v106, %v406
    %v408 = vpop.f32.mrb[0].mxu0
    %v409 = vadd.f32 %v102, %v408
    %v410 = vpop.f32.mrb[0].mxu0
    %v411 = vadd.f32 %v106, %v410
    %412 = vmatprep.mubr.bf16.mxu0 0
    %413 = vmatmul.mubr.bf16.gmra.mrb[0].mxu0 %v242
    %v414 = vpop.f32.mrb[0].mxu0
    %v415 = vadd.f32 %v102, %v414
    %v416 = vpop.f32.mrb[0].mxu0
    %v417 = vadd.f32 %v106, %v416
    %v418 = vpop.f32.mrb[0].mxu0
    %v419 = vadd.f32 %v102, %v418
    %v420 = vpop.f32.mrb[0].mxu0
    %v421 = vadd.f32 %v106, %v420
    %422 = vmatprep.mubr.bf16.mxu0 0
    %423 = vmatmul.mubr.bf16.gmra.mrb[0].mxu0 %v245
    %v424 = vpop.f32.mrb[0].mxu0
    %v425 = vadd.f32 %v102, %v424
    %v426 = vpop.f32.mrb[0].mxu0
    %v427 = vadd.f32 %v106, %v426
    %v428 = vpop.f32.mrb[0].mxu0
    %v429 = vadd.f32 %v102, %v428
    %v430 = vpop.f32.mrb[0].mxu0
    %v431 = vadd.f32 %v106, %v430
    %432 = vmatprep.mubr.bf16.mxu0 0
    %433 = vmatmul.mubr.bf16.gmra.mrb[0].mxu0 %v248
    %v434 = vpop.f32.mrb[0].mxu0
    %v435 = vadd.f32 %v102, %v434
    %v436 = vpop.f32.mrb[0].mxu0
    %v437 = vadd.f32 %v106, %v436
    %v438 = vpop.f32.mrb[0].mxu0
    %v439 = vadd.f32 %v102, %v438
    %v440 = vpop.f32.mrb[0].mxu0
    %v441 = vadd.f32 %v106, %v440
    %442 = vmatprep.mubr.bf16.mxu0 0
    %443 = vmatmul.mubr.bf16.gmra.mrb[0].mxu0 %v251
    %v444 = vpop.f32.mrb[0].mxu0
    %v445 = vadd.f32 %v102, %v444
    %v446 = vpop.f32.mrb[0].mxu0
    %v447 = vadd.f32 %v106, %v446
    %v448 = vpop.f32.mrb[0].mxu0
    %v449 = vadd.f32 %v102, %v448
    %v450 = vpop.f32.mrb[0].mxu0
    %v451 = vadd.f32 %v106, %v450
    %452 = vdwg.mxu0
    %v453 = vmax.f32 %v295, 0.0
    %v454 = vmax.f32 %v297, 0.0
    %v455 = vmax.f32 %v299, 0.0
    %v456 = vmax.f32 %v301, 0.0
    %v457 = vmax.f32 %v305, 0.0
    %v458 = vmax.f32 %v307, 0.0
    %v459 = vmax.f32 %v309, 0.0
    %v460 = vmax.f32 %v311, 0.0
    %v461 = vmax.f32 %v315, 0.0
    %v462 = vmax.f32 %v317, 0.0
    %v463 = vmax.f32 %v319, 0.0
    %v464 = vmax.f32 %v321, 0.0
    %v465 = vmax.f32 %v325, 0.0
    %v466 = vmax.f32 %v327, 0.0
    %v467 = vmax.f32 %v329, 0.0
    %v468 = vmax.f32 %v331, 0.0
    %v469 = vmax.f32 %v335, 0.0
    %v470 = vmax.f32 %v337, 0.0
    %v471 = vmax.f32 %v339, 0.0
    %v472 = vmax.f32 %v341, 0.0
    %v473 = vmax.f32 %v345, 0.0
    %v474 = vmax.f32 %v347, 0.0
    %v475 = vmax.f32 %v349, 0.0
    %v476 = vmax.f32 %v351, 0.0
    %v477 = vmax.f32 %v355, 0.0
    %v478 = vmax.f32 %v357, 0.0
    %v479 = vmax.f32 %v359, 0.0
    %v480 = vmax.f32 %v361, 0.0
    %v481 = vmax.f32 %v365, 0.0
    %v482 = vmax.f32 %v367, 0.0
    %v483 = vmax.f32 %v369, 0.0
    %v484 = vmax.f32 %v371, 0.0
    %v485 = vmax.f32 %v375, 0.0
    %v486 = vmax.f32 %v377, 0.0
    %v487 = vmax.f32 %v379, 0.0
    %v488 = vmax.f32 %v381, 0.0
    %v489 = vmax.f32 %v385, 0.0
    %v490 = vmax.f32 %v387, 0.0
    %v491 = vmax.f32 %v389, 0.0
    %v492 = vmax.f32 %v391, 0.0
    %v493 = vmax.f32 %v395, 0.0
    %v494 = vmax.f32 %v397, 0.0
    %v495 = vmax.f32 %v399, 0.0
    %v496 = vmax.f32 %v401, 0.0
    %v497 = vmax.f32 %v405, 0.0
    %v498 = vmax.f32 %v407, 0.0
    %v499 = vmax.f32 %v409, 0.0
    %v500 = vmax.f32 %v411, 0.0
    %v501 = vmax.f32 %v415, 0.0
    %v502 = vmax.f32 %v417, 0.0
    %v503 = vmax.f32 %v419, 0.0
    %v504 = vmax.f32 %v421, 0.0
    %v505 = vmax.f32 %v425, 0.0
    %v506 = vmax.f32 %v427, 0.0
    %v507 = vmax.f32 %v429, 0.0
    %v508 = vmax.f32 %v431, 0.0
    %v509 = vmax.f32 %v435, 0.0
    %v510 = vmax.f32 %v437, 0.0
    %v511 = vmax.f32 %v439, 0.0
    %v512 = vmax.f32 %v441, 0.0
    %v513 = vmax.f32 %v445, 0.0
    %v514 = vmax.f32 %v447, 0.0
    %v515 = vmax.f32 %v449, 0.0
    %v516 = vmax.f32 %v451, 0.0
    %v517 = vpack.c.bf16 %v455, %v453
    %v518 = vpack.c.bf16 %v456, %v454
    %v519 = vpack.c.bf16 %v459, %v457
    %v520 = vpack.c.bf16 %v460, %v458
    %v521 = vpack.c.bf16 %v463, %v461
    %v522 = vpack.c.bf16 %v464, %v462
    %v523 = vpack.c.bf16 %v467, %v465
    %v524 = vpack.c.bf16 %v468, %v466
    %v525 = vpack.c.bf16 %v471, %v469
    %v526 = vpack.c.bf16 %v472, %v470
    %v527 = vpack.c.bf16 %v475, %v473
    %v528 = vpack.c.bf16 %v476, %v474
    %v529 = vpack.c.bf16 %v479, %v477
    %v530 = vpack.c.bf16 %v480, %v478
    %v531 = vpack.c.bf16 %v483, %v481
    %v532 = vpack.c.bf16 %v484, %v482
    %v533 = vpack.c.bf16 %v487, %v485
    %v534 = vpack.c.bf16 %v488, %v486
    %v535 = vpack.c.bf16 %v491, %v489
    %v536 = vpack.c.bf16 %v492, %v490
    %v537 = vpack.c.bf16 %v495, %v493
    %v538 = vpack.c.bf16 %v496, %v494
    %v539 = vpack.c.bf16 %v499, %v497
    %v540 = vpack.c.bf16 %v500, %v498
    %v541 = vpack.c.bf16 %v503, %v501
    %v542 = vpack.c.bf16 %v504, %v502
    %v543 = vpack.c.bf16 %v507, %v505
    %v544 = vpack.c.bf16 %v508, %v506
    %v545 = vpack.c.bf16 %v511, %v509
    %v546 = vpack.c.bf16 %v512, %v510
    %v547 = vpack.c.bf16 %v515, %v513
    %v548 = vpack.c.bf16 %v516, %v514
    %v549 = vld [vmem:[#allocation2] sm:$0xff]
    %v550 = vld [vmem:[#allocation2 + $0x8] sm:$0xff]
    %v551 = vld [vmem:[#allocation2 + $0x10] sm:$0xff]
    %v552 = vld [vmem:[#allocation2 + $0x18] sm:$0xff]
    %v553 = vld [vmem:[#allocation2 + $0x20] sm:$0xff]
    %v554 = vld [vmem:[#allocation2 + $0x28] sm:$0xff]
    %v555 = vld [vmem:[#allocation2 + $0x30] sm:$0xff]
    %v556 = vld [vmem:[#allocation2 + $0x38] sm:$0xff]
    %v557 = vld [vmem:[#allocation2 + $0x40] sm:$0xff]
    %v558 = vld [vmem:[#allocation2 + $0x48] sm:$0xff]
    %v559 = vld [vmem:[#allocation2 + $0x50] sm:$0xff]
    %v560 = vld [vmem:[#allocation2 + $0x58] sm:$0xff]
    %v561 = vld [vmem:[#allocation2 + $0x60] sm:$0xff]
    %v562 = vld [vmem:[#allocation2 + $0x68] sm:$0xff]
    %v563 = vld [vmem:[#allocation2 + $0x70] sm:$0xff]
    %v564 = vld [vmem:[#allocation2 + $0x78] sm:$0xff]
    %v565 = vld [vmem:[#allocation2 + $0x80] sm:$0xff]
    %v566 = vld [vmem:[#allocation2 + $0x88] sm:$0xff]
    %v567 = vld [vmem:[#allocation2 + $0x90] sm:$0xff]
    %v568 = vld [vmem:[#allocation2 + $0x98] sm:$0xff]
    %v569 = vld [vmem:[#allocation2 + $0xa0] sm:$0xff]
    %v570 = vld [vmem:[#allocation2 + $0xa8] sm:$0xff]
    %v571 = vld [vmem:[#allocation2 + $0xb0] sm:$0xff]
    %v572 = vld [vmem:[#allocation2 + $0xb8] sm:$0xff]
    %v573 = vld [vmem:[#allocation2 + $0xc0] sm:$0xff]
    %v574 = vld [vmem:[#allocation2 + $0xc8] sm:$0xff]
    %v575 = vld [vmem:[#allocation2 + $0xd0] sm:$0xff]
    %v576 = vld [vmem:[#allocation2 + $0xd8] sm:$0xff]
    %v577 = vld [vmem:[#allocation2 + $0xe0] sm:$0xff]
    %v578 = vld [vmem:[#allocation2 + $0xe8] sm:$0xff]
    %v579 = vld [vmem:[#allocation2 + $0xf0] sm:$0xff]
    %v580 = vld [vmem:[#allocation2 + $0xf8] sm:$0xff]
    %v581 = vld [vmem:[%s4] sm:$0x3]
    %v583 = vlaneseq
    %v584 = vshrl.u32 %v583, 7
    %v585 = vsub.s32 0, %v584
    %v586 = vrot.slane %v581, %v585
    %v587 = vlaneseq
    %v588 = vshrl.u32 %v587, 7
    %v589 = vsub.s32 1, %v588
    %v590 = vrot.slane %v581, %v589
    %v625 = vunpack.c.l.b16 %v549
    %v626 = vunpack.c.h.b16 %v549
    %v627 = vunpack.c.l.b16 %v550
    %v628 = vunpack.c.h.b16 %v550
    %v629 = vunpack.c.l.b16 %v551
    %v630 = vunpack.c.h.b16 %v551
    %v631 = vunpack.c.l.b16 %v552
    %v632 = vunpack.c.h.b16 %v552
    %v633 = vunpack.c.l.b16 %v553
    %v634 = vunpack.c.h.b16 %v553
    %v635 = vunpack.c.l.b16 %v554
    %v636 = vunpack.c.h.b16 %v554
    %v637 = vunpack.c.l.b16 %v555
    %v638 = vunpack.c.h.b16 %v555
    %v639 = vunpack.c.l.b16 %v556
    %v640 = vunpack.c.h.b16 %v556
    %v641 = vunpack.c.l.b16 %v557
    %v642 = vunpack.c.h.b16 %v557
    %v643 = vunpack.c.l.b16 %v558
    %v644 = vunpack.c.h.b16 %v558
    %v645 = vunpack.c.l.b16 %v559
    %v646 = vunpack.c.h.b16 %v559
    %v647 = vunpack.c.l.b16 %v560
    %v648 = vunpack.c.h.b16 %v560
    %v649 = vunpack.c.l.b16 %v561
    %v650 = vunpack.c.h.b16 %v561
    %v651 = vunpack.c.l.b16 %v562
    %v652 = vunpack.c.h.b16 %v562
    %v653 = vunpack.c.l.b16 %v563
    %v654 = vunpack.c.h.b16 %v563
    %v655 = vunpack.c.l.b16 %v564
    %v656 = vunpack.c.h.b16 %v564
    %v657 = vunpack.c.l.b16 %v565
    %v658 = vunpack.c.h.b16 %v565
    %v659 = vunpack.c.l.b16 %v566
    %v660 = vunpack.c.h.b16 %v566
    %v661 = vunpack.c.l.b16 %v567
    %v662 = vunpack.c.h.b16 %v567
    %v663 = vunpack.c.l.b16 %v568
    %v664 = vunpack.c.h.b16 %v568
    %v665 = vunpack.c.l.b16 %v569
    %v666 = vunpack.c.h.b16 %v569
    %v667 = vunpack.c.l.b16 %v570
    %v668 = vunpack.c.h.b16 %v570
    %v669 = vunpack.c.l.b16 %v571
    %v670 = vunpack.c.h.b16 %v571
    %v671 = vunpack.c.l.b16 %v572
    %v672 = vunpack.c.h.b16 %v572
    %v673 = vunpack.c.l.b16 %v573
    %v674 = vunpack.c.h.b16 %v573
    %v675 = vunpack.c.l.b16 %v574
    %v676 = vunpack.c.h.b16 %v574
    %v677 = vunpack.c.l.b16 %v575
    %v678 = vunpack.c.h.b16 %v575
    %v679 = vunpack.c.l.b16 %v576
    %v680 = vunpack.c.h.b16 %v576
    %v681 = vunpack.c.l.b16 %v577
    %v682 = vunpack.c.h.b16 %v577
    %v683 = vunpack.c.l.b16 %v578
    %v684 = vunpack.c.h.b16 %v578
    %v685 = vunpack.c.l.b16 %v579
    %v686 = vunpack.c.h.b16 %v579
    %v687 = vunpack.c.l.b16 %v580
    %v688 = vunpack.c.h.b16 %v580
    %v689 = vpack.c.b16 %v627, %v625
    %v690 = vpack.c.b16 %v628, %v626
    %v691 = vpack.c.b16 %v631, %v629
    %v692 = vpack.c.b16 %v632, %v630
    %v693 = vpack.c.b16 %v635, %v633
    %v694 = vpack.c.b16 %v636, %v634
    %v695 = vpack.c.b16 %v639, %v637
    %v696 = vpack.c.b16 %v640, %v638
    %v697 = vpack.c.b16 %v643, %v641
    %v698 = vpack.c.b16 %v644, %v642
    %v699 = vpack.c.b16 %v647, %v645
    %v700 = vpack.c.b16 %v648, %v646
    %v701 = vpack.c.b16 %v651, %v649
    %v702 = vpack.c.b16 %v652, %v650
    %v703 = vpack.c.b16 %v655, %v653
    %v704 = vpack.c.b16 %v656, %v654
    %v705 = vpack.c.b16 %v659, %v657
    %v706 = vpack.c.b16 %v660, %v658
    %v707 = vpack.c.b16 %v663, %v661
    %v708 = vpack.c.b16 %v664, %v662
    %v709 = vpack.c.b16 %v667, %v665
    %v710 = vpack.c.b16 %v668, %v666
    %v711 = vpack.c.b16 %v671, %v669
    %v712 = vpack.c.b16 %v672, %v670
    %v713 = vpack.c.b16 %v675, %v673
    %v714 = vpack.c.b16 %v676, %v674
    %v715 = vpack.c.b16 %v679, %v677
    %v716 = vpack.c.b16 %v680, %v678
    %v717 = vpack.c.b16 %v683, %v681
    %v718 = vpack.c.b16 %v684, %v682
    %v719 = vpack.c.b16 %v687, %v685
    %v720 = vpack.c.b16 %v688, %v686
    %753 = vmatprep.subr.bf16.mxu0 %v690
    %754 = vmatpush1.bf16.msra.mxu0 %v689
    %755 = vmatprep.subr.bf16.mxu0 %v692
    %756 = vmatpush1.bf16.msra.mxu0 %v691
    %757 = vmatprep.subr.bf16.mxu0 %v694
    %758 = vmatpush1.bf16.msra.mxu0 %v693
    %759 = vmatprep.subr.bf16.mxu0 %v696
    %760 = vmatpush1.bf16.msra.mxu0 %v695
    %761 = vmatprep.subr.bf16.mxu0 %v698
    %762 = vmatpush1.bf16.msra.mxu0 %v697
    %763 = vmatprep.subr.bf16.mxu0 %v700
    %764 = vmatpush1.bf16.msra.mxu0 %v699
    %765 = vmatprep.subr.bf16.mxu0 %v702
    %766 = vmatpush1.bf16.msra.mxu0 %v701
    %767 = vmatprep.subr.bf16.mxu0 %v704
    %768 = vmatpush1.bf16.msra.mxu0 %v703
    %769 = vmatprep.subr.bf16.mxu0 %v706
    %770 = vmatpush1.bf16.msra.mxu0 %v705
    %771 = vmatprep.subr.bf16.mxu0 %v708
    %772 = vmatpush1.bf16.msra.mxu0 %v707
    %773 = vmatprep.subr.bf16.mxu0 %v710
    %774 = vmatpush1.bf16.msra.mxu0 %v709
    %775 = vmatprep.subr.bf16.mxu0 %v712
    %776 = vmatpush1.bf16.msra.mxu0 %v711
    %777 = vmatprep.subr.bf16.mxu0 %v714
    %778 = vmatpush1.bf16.msra.mxu0 %v713
    %779 = vmatprep.subr.bf16.mxu0 %v716
    %780 = vmatpush1.bf16.msra.mxu0 %v715
    %781 = vmatprep.subr.bf16.mxu0 %v718
    %782 = vmatpush1.bf16.msra.mxu0 %v717
    %783 = vmatprep.subr.bf16.mxu0 %v720
    %784 = vmatpush1.bf16.msra.mxu0 %v719
    %785 = vmatprep.mubr.bf16.mxu0 %v518
    %786 = vmatmul.mubr.bf16.gmra.mrb[0].mxu0 %v517
    %v787 = vpop.f32.mrb[0].mxu0
    %v788 = vadd.f32 %v586, %v787
    %v789 = vpop.f32.mrb[0].mxu0
    %v790 = vadd.f32 %v590, %v789
    %v791 = vpop.f32.mrb[0].mxu0
    %v792 = vadd.f32 %v586, %v791
    %v793 = vpop.f32.mrb[0].mxu0
    %v794 = vadd.f32 %v590, %v793
    %795 = vmatprep.mubr.bf16.mxu0 %v520
    %796 = vmatmul.mubr.bf16.gmra.mrb[0].mxu0 %v519
    %v797 = vpop.f32.mrb[0].mxu0
    %v798 = vadd.f32 %v586, %v797
    %v799 = vpop.f32.mrb[0].mxu0
    %v800 = vadd.f32 %v590, %v799
    %v801 = vpop.f32.mrb[0].mxu0
    %v802 = vadd.f32 %v586, %v801
    %v803 = vpop.f32.mrb[0].mxu0
    %v804 = vadd.f32 %v590, %v803
    %805 = vmatprep.mubr.bf16.mxu0 %v522
    %806 = vmatmul.mubr.bf16.gmra.mrb[0].mxu0 %v521
    %v807 = vpop.f32.mrb[0].mxu0
    %v808 = vadd.f32 %v586, %v807
    %v809 = vpop.f32.mrb[0].mxu0
    %v810 = vadd.f32 %v590, %v809
    %v811 = vpop.f32.mrb[0].mxu0
    %v812 = vadd.f32 %v586, %v811
    %v813 = vpop.f32.mrb[0].mxu0
    %v814 = vadd.f32 %v590, %v813
    %815 = vmatprep.mubr.bf16.mxu0 %v524
    %816 = vmatmul.mubr.bf16.gmra.mrb[0].mxu0 %v523
    %v817 = vpop.f32.mrb[0].mxu0
    %v818 = vadd.f32 %v586, %v817
    %v819 = vpop.f32.mrb[0].mxu0
    %v820 = vadd.f32 %v590, %v819
    %v821 = vpop.f32.mrb[0].mxu0
    %v822 = vadd.f32 %v586, %v821
    %v823 = vpop.f32.mrb[0].mxu0
    %v824 = vadd.f32 %v590, %v823
    %825 = vmatprep.mubr.bf16.mxu0 %v526
    %826 = vmatmul.mubr.bf16.gmra.mrb[0].mxu0 %v525
    %v827 = vpop.f32.mrb[0].mxu0
    %v828 = vadd.f32 %v586, %v827
    %v829 = vpop.f32.mrb[0].mxu0
    %v830 = vadd.f32 %v590, %v829
    %v831 = vpop.f32.mrb[0].mxu0
    %v832 = vadd.f32 %v586, %v831
    %v833 = vpop.f32.mrb[0].mxu0
    %v834 = vadd.f32 %v590, %v833
    %835 = vmatprep.mubr.bf16.mxu0 %v528
    %836 = vmatmul.mubr.bf16.gmra.mrb[0].mxu0 %v527
    %v837 = vpop.f32.mrb[0].mxu0
    %v838 = vadd.f32 %v586, %v837
    %v839 = vpop.f32.mrb[0].mxu0
    %v840 = vadd.f32 %v590, %v839
    %v841 = vpop.f32.mrb[0].mxu0
    %v842 = vadd.f32 %v586, %v841
    %v843 = vpop.f32.mrb[0].mxu0
    %v844 = vadd.f32 %v590, %v843
    %845 = vmatprep.mubr.bf16.mxu0 %v530
    %846 = vmatmul.mubr.bf16.gmra.mrb[0].mxu0 %v529
    %v847 = vpop.f32.mrb[0].mxu0
    %v848 = vadd.f32 %v586, %v847
    %v849 = vpop.f32.mrb[0].mxu0
    %v850 = vadd.f32 %v590, %v849
    %v851 = vpop.f32.mrb[0].mxu0
    %v852 = vadd.f32 %v586, %v851
    %v853 = vpop.f32.mrb[0].mxu0
    %v854 = vadd.f32 %v590, %v853
    %855 = vmatprep.mubr.bf16.mxu0 %v532
    %856 = vmatmul.mubr.bf16.gmra.mrb[0].mxu0 %v531
    %v857 = vpop.f32.mrb[0].mxu0
    %v858 = vadd.f32 %v586, %v857
    %v859 = vpop.f32.mrb[0].mxu0
    %v860 = vadd.f32 %v590, %v859
    %v861 = vpop.f32.mrb[0].mxu0
    %v862 = vadd.f32 %v586, %v861
    %v863 = vpop.f32.mrb[0].mxu0
    %v864 = vadd.f32 %v590, %v863
    %865 = vmatprep.mubr.bf16.mxu0 %v534
    %866 = vmatmul.mubr.bf16.gmra.mrb[0].mxu0 %v533
    %v867 = vpop.f32.mrb[0].mxu0
    %v868 = vadd.f32 %v586, %v867
    %v869 = vpop.f32.mrb[0].mxu0
    %v870 = vadd.f32 %v590, %v869
    %v871 = vpop.f32.mrb[0].mxu0
    %v872 = vadd.f32 %v586, %v871
    %v873 = vpop.f32.mrb[0].mxu0
    %v874 = vadd.f32 %v590, %v873
    %875 = vmatprep.mubr.bf16.mxu0 %v536
    %876 = vmatmul.mubr.bf16.gmra.mrb[0].mxu0 %v535
    %v877 = vpop.f32.mrb[0].mxu0
    %v878 = vadd.f32 %v586, %v877
    %v879 = vpop.f32.mrb[0].mxu0
    %v880 = vadd.f32 %v590, %v879
    %v881 = vpop.f32.mrb[0].mxu0
    %v882 = vadd.f32 %v586, %v881
    %v883 = vpop.f32.mrb[0].mxu0
    %v884 = vadd.f32 %v590, %v883
    %885 = vmatprep.mubr.bf16.mxu0 %v538
    %886 = vmatmul.mubr.bf16.gmra.mrb[0].mxu0 %v537
    %v887 = vpop.f32.mrb[0].mxu0
    %v888 = vadd.f32 %v586, %v887
    %v889 = vpop.f32.mrb[0].mxu0
    %v890 = vadd.f32 %v590, %v889
    %v891 = vpop.f32.mrb[0].mxu0
    %v892 = vadd.f32 %v586, %v891
    %v893 = vpop.f32.mrb[0].mxu0
    %v894 = vadd.f32 %v590, %v893
    %895 = vmatprep.mubr.bf16.mxu0 %v540
    %896 = vmatmul.mubr.bf16.gmra.mrb[0].mxu0 %v539
    %v897 = vpop.f32.mrb[0].mxu0
    %v898 = vadd.f32 %v586, %v897
    %v899 = vpop.f32.mrb[0].mxu0
    %v900 = vadd.f32 %v590, %v899
    %v901 = vpop.f32.mrb[0].mxu0
    %v902 = vadd.f32 %v586, %v901
    %v903 = vpop.f32.mrb[0].mxu0
    %v904 = vadd.f32 %v590, %v903
    %905 = vmatprep.mubr.bf16.mxu0 %v542
    %906 = vmatmul.mubr.bf16.gmra.mrb[0].mxu0 %v541
    %v907 = vpop.f32.mrb[0].mxu0
    %v908 = vadd.f32 %v586, %v907
    %v909 = vpop.f32.mrb[0].mxu0
    %v910 = vadd.f32 %v590, %v909
    %v911 = vpop.f32.mrb[0].mxu0
    %v912 = vadd.f32 %v586, %v911
    %v913 = vpop.f32.mrb[0].mxu0
    %v914 = vadd.f32 %v590, %v913
    %915 = vmatprep.mubr.bf16.mxu0 %v544
    %916 = vmatmul.mubr.bf16.gmra.mrb[0].mxu0 %v543
    %v917 = vpop.f32.mrb[0].mxu0
    %v918 = vadd.f32 %v586, %v917
    %v919 = vpop.f32.mrb[0].mxu0
    %v920 = vadd.f32 %v590, %v919
    %v921 = vpop.f32.mrb[0].mxu0
    %v922 = vadd.f32 %v586, %v921
    %v923 = vpop.f32.mrb[0].mxu0
    %v924 = vadd.f32 %v590, %v923
    %925 = vmatprep.mubr.bf16.mxu0 %v546
    %926 = vmatmul.mubr.bf16.gmra.mrb[0].mxu0 %v545
    %v927 = vpop.f32.mrb[0].mxu0
    %v928 = vadd.f32 %v586, %v927
    %v929 = vpop.f32.mrb[0].mxu0
    %v930 = vadd.f32 %v590, %v929
    %v931 = vpop.f32.mrb[0].mxu0
    %v932 = vadd.f32 %v586, %v931
    %v933 = vpop.f32.mrb[0].mxu0
    %v934 = vadd.f32 %v590, %v933
    %935 = vmatprep.mubr.bf16.mxu0 %v548
    %936 = vmatmul.mubr.bf16.gmra.mrb[0].mxu0 %v547
    %v937 = vpop.f32.mrb[0].mxu0
    %v938 = vadd.f32 %v586, %v937
    %v939 = vpop.f32.mrb[0].mxu0
    %v940 = vadd.f32 %v590, %v939
    %v941 = vpop.f32.mrb[0].mxu0
    %v942 = vadd.f32 %v586, %v941
    %v943 = vpop.f32.mrb[0].mxu0
    %v944 = vadd.f32 %v590, %v943
    %945 = vdwg.mxu0
    %v946 = vmax.f32 %v788, 0.0
    %v947 = vmax.f32 %v790, 0.0
    %v948 = vmax.f32 %v792, 0.0
    %v949 = vmax.f32 %v794, 0.0
    %v950 = vmax.f32 %v798, 0.0
    %v951 = vmax.f32 %v800, 0.0
    %v952 = vmax.f32 %v802, 0.0
    %v953 = vmax.f32 %v804, 0.0
    %v954 = vmax.f32 %v808, 0.0
    %v955 = vmax.f32 %v810, 0.0
    %v956 = vmax.f32 %v812, 0.0
    %v957 = vmax.f32 %v814, 0.0
    %v958 = vmax.f32 %v818, 0.0
    %v959 = vmax.f32 %v820, 0.0
    %v960 = vmax.f32 %v822, 0.0
    %v961 = vmax.f32 %v824, 0.0
    %v962 = vmax.f32 %v828, 0.0
    %v963 = vmax.f32 %v830, 0.0
    %v964 = vmax.f32 %v832, 0.0
    %v965 = vmax.f32 %v834, 0.0
    %v966 = vmax.f32 %v838, 0.0
    %v967 = vmax.f32 %v840, 0.0
    %v968 = vmax.f32 %v842, 0.0
    %v969 = vmax.f32 %v844, 0.0
    %v970 = vmax.f32 %v848, 0.0
    %v971 = vmax.f32 %v850, 0.0
    %v972 = vmax.f32 %v852, 0.0
    %v973 = vmax.f32 %v854, 0.0
    %v974 = vmax.f32 %v858, 0.0
    %v975 = vmax.f32 %v860, 0.0
    %v976 = vmax.f32 %v862, 0.0
    %v977 = vmax.f32 %v864, 0.0
    %v978 = vmax.f32 %v868, 0.0
    %v979 = vmax.f32 %v870, 0.0
    %v980 = vmax.f32 %v872, 0.0
    %v981 = vmax.f32 %v874, 0.0
    %v982 = vmax.f32 %v878, 0.0
    %v983 = vmax.f32 %v880, 0.0
    %v984 = vmax.f32 %v882, 0.0
    %v985 = vmax.f32 %v884, 0.0
    %v986 = vmax.f32 %v888, 0.0
    %v987 = vmax.f32 %v890, 0.0
    %v988 = vmax.f32 %v892, 0.0
    %v989 = vmax.f32 %v894, 0.0
    %v990 = vmax.f32 %v898, 0.0
    %v991 = vmax.f32 %v900, 0.0
    %v992 = vmax.f32 %v902, 0.0
    %v993 = vmax.f32 %v904, 0.0
    %v994 = vmax.f32 %v908, 0.0
    %v995 = vmax.f32 %v910, 0.0
    %v996 = vmax.f32 %v912, 0.0
    %v997 = vmax.f32 %v914, 0.0
    %v998 = vmax.f32 %v918, 0.0
    %v999 = vmax.f32 %v920, 0.0
    %v1000 = vmax.f32 %v922, 0.0
    %v1001 = vmax.f32 %v924, 0.0
    %v1002 = vmax.f32 %v928, 0.0
    %v1003 = vmax.f32 %v930, 0.0
    %v1004 = vmax.f32 %v932, 0.0
    %v1005 = vmax.f32 %v934, 0.0
    %v1006 = vmax.f32 %v938, 0.0
    %v1007 = vmax.f32 %v940, 0.0
    %v1008 = vmax.f32 %v942, 0.0
    %v1009 = vmax.f32 %v944, 0.0
    %v1010 = vpack.c.bf16 %v948, %v946
    %v1011 = vpack.c.bf16 %v949, %v947
    %v1012 = vpack.c.bf16 %v952, %v950
    %v1013 = vpack.c.bf16 %v953, %v951
    %v1014 = vpack.c.bf16 %v956, %v954
    %v1015 = vpack.c.bf16 %v957, %v955
    %v1016 = vpack.c.bf16 %v960, %v958
    %v1017 = vpack.c.bf16 %v961, %v959
    %v1018 = vpack.c.bf16 %v964, %v962
    %v1019 = vpack.c.bf16 %v965, %v963
    %v1020 = vpack.c.bf16 %v968, %v966
    %v1021 = vpack.c.bf16 %v969, %v967
    %v1022 = vpack.c.bf16 %v972, %v970
    %v1023 = vpack.c.bf16 %v973, %v971
    %v1024 = vpack.c.bf16 %v976, %v974
    %v1025 = vpack.c.bf16 %v977, %v975
    %v1026 = vpack.c.bf16 %v980, %v978
    %v1027 = vpack.c.bf16 %v981, %v979
    %v1028 = vpack.c.bf16 %v984, %v982
    %v1029 = vpack.c.bf16 %v985, %v983
    %v1030 = vpack.c.bf16 %v988, %v986
    %v1031 = vpack.c.bf16 %v989, %v987
    %v1032 = vpack.c.bf16 %v992, %v990
    %v1033 = vpack.c.bf16 %v993, %v991
    %v1034 = vpack.c.bf16 %v996, %v994
    %v1035 = vpack.c.bf16 %v997, %v995
    %v1036 = vpack.c.bf16 %v1000, %v998
    %v1037 = vpack.c.bf16 %v1001, %v999
    %v1038 = vpack.c.bf16 %v1004, %v1002
    %v1039 = vpack.c.bf16 %v1005, %v1003
    %v1040 = vpack.c.bf16 %v1008, %v1006
    %v1041 = vpack.c.bf16 %v1009, %v1007
    %v1042 = vld [vmem:[#allocation5] sm:$0xff]
    %v1043 = vld [vmem:[#allocation5 + $0x8] sm:$0xff]
    %v1044 = vld [vmem:[#allocation5 + $0x10] sm:$0xff]
    %v1045 = vld [vmem:[#allocation5 + $0x18] sm:$0xff]
    %v1046 = vld [vmem:[#allocation5 + $0x20] sm:$0xff]
    %v1047 = vld [vmem:[#allocation5 + $0x28] sm:$0xff]
    %v1048 = vld [vmem:[#allocation5 + $0x30] sm:$0xff]
    %v1049 = vld [vmem:[#allocation5 + $0x38] sm:$0xff]
    %v1050 = vld [vmem:[#allocation5 + $0x40] sm:$0xff]
    %v1051 = vld [vmem:[#allocation5 + $0x48] sm:$0xff]
    %v1052 = vld [vmem:[#allocation5 + $0x50] sm:$0xff]
    %v1053 = vld [vmem:[#allocation5 + $0x58] sm:$0xff]
    %v1054 = vld [vmem:[#allocation5 + $0x60] sm:$0xff]
    %v1055 = vld [vmem:[#allocation5 + $0x68] sm:$0xff]
    %v1056 = vld [vmem:[#allocation5 + $0x70] sm:$0xff]
    %v1057 = vld [vmem:[#allocation5 + $0x78] sm:$0xff]
    %v1058 = vld [vmem:[#allocation5 + $0x80] sm:$0xff]
    %v1059 = vld [vmem:[#allocation5 + $0x88] sm:$0xff]
    %v1060 = vld [vmem:[#allocation5 + $0x90] sm:$0xff]
    %v1061 = vld [vmem:[#allocation5 + $0x98] sm:$0xff]
    %v1062 = vld [vmem:[#allocation5 + $0xa0] sm:$0xff]
    %v1063 = vld [vmem:[#allocation5 + $0xa8] sm:$0xff]
    %v1064 = vld [vmem:[#allocation5 + $0xb0] sm:$0xff]
    %v1065 = vld [vmem:[#allocation5 + $0xb8] sm:$0xff]
    %v1066 = vld [vmem:[#allocation5 + $0xc0] sm:$0xff]
    %v1067 = vld [vmem:[#allocation5 + $0xc8] sm:$0xff]
    %v1068 = vld [vmem:[#allocation5 + $0xd0] sm:$0xff]
    %v1069 = vld [vmem:[#allocation5 + $0xd8] sm:$0xff]
    %v1070 = vld [vmem:[#allocation5 + $0xe0] sm:$0xff]
    %v1071 = vld [vmem:[#allocation5 + $0xe8] sm:$0xff]
    %v1072 = vld [vmem:[#allocation5 + $0xf0] sm:$0xff]
    %v1073 = vld [vmem:[#allocation5 + $0xf8] sm:$0xff]
    %v1074 = vld [vmem:[%s6] sm:$0x3]
    %v1076 = vlaneseq
    %v1077 = vshrl.u32 %v1076, 7
    %v1078 = vsub.s32 0, %v1077
    %v1079 = vrot.slane %v1074, %v1078
    %v1080 = vlaneseq
    %v1081 = vshrl.u32 %v1080, 7
    %v1082 = vsub.s32 1, %v1081
    %v1083 = vrot.slane %v1074, %v1082
    %v1118 = vunpack.c.l.b16 %v1042
    %v1119 = vunpack.c.h.b16 %v1042
    %v1120 = vunpack.c.l.b16 %v1043
    %v1121 = vunpack.c.h.b16 %v1043
    %v1122 = vunpack.c.l.b16 %v1044
    %v1123 = vunpack.c.h.b16 %v1044
    %v1124 = vunpack.c.l.b16 %v1045
    %v1125 = vunpack.c.h.b16 %v1045
    %v1126 = vunpack.c.l.b16 %v1046
    %v1127 = vunpack.c.h.b16 %v1046
    %v1128 = vunpack.c.l.b16 %v1047
    %v1129 = vunpack.c.h.b16 %v1047
    %v1130 = vunpack.c.l.b16 %v1048
    %v1131 = vunpack.c.h.b16 %v1048
    %v1132 = vunpack.c.l.b16 %v1049
    %v1133 = vunpack.c.h.b16 %v1049
    %v1134 = vunpack.c.l.b16 %v1050
    %v1135 = vunpack.c.h.b16 %v1050
    %v1136 = vunpack.c.l.b16 %v1051
    %v1137 = vunpack.c.h.b16 %v1051
    %v1138 = vunpack.c.l.b16 %v1052
    %v1139 = vunpack.c.h.b16 %v1052
    %v1140 = vunpack.c.l.b16 %v1053
    %v1141 = vunpack.c.h.b16 %v1053
    %v1142 = vunpack.c.l.b16 %v1054
    %v1143 = vunpack.c.h.b16 %v1054
    %v1144 = vunpack.c.l.b16 %v1055
    %v1145 = vunpack.c.h.b16 %v1055
    %v1146 = vunpack.c.l.b16 %v1056
    %v1147 = vunpack.c.h.b16 %v1056
    %v1148 = vunpack.c.l.b16 %v1057
    %v1149 = vunpack.c.h.b16 %v1057
    %v1150 = vunpack.c.l.b16 %v1058
    %v1151 = vunpack.c.h.b16 %v1058
    %v1152 = vunpack.c.l.b16 %v1059
    %v1153 = vunpack.c.h.b16 %v1059
    %v1154 = vunpack.c.l.b16 %v1060
    %v1155 = vunpack.c.h.b16 %v1060
    %v1156 = vunpack.c.l.b16 %v1061
    %v1157 = vunpack.c.h.b16 %v1061
    %v1158 = vunpack.c.l.b16 %v1062
    %v1159 = vunpack.c.h.b16 %v1062
    %v1160 = vunpack.c.l.b16 %v1063
    %v1161 = vunpack.c.h.b16 %v1063
    %v1162 = vunpack.c.l.b16 %v1064
    %v1163 = vunpack.c.h.b16 %v1064
    %v1164 = vunpack.c.l.b16 %v1065
    %v1165 = vunpack.c.h.b16 %v1065
    %v1166 = vunpack.c.l.b16 %v1066
    %v1167 = vunpack.c.h.b16 %v1066
    %v1168 = vunpack.c.l.b16 %v1067
    %v1169 = vunpack.c.h.b16 %v1067
    %v1170 = vunpack.c.l.b16 %v1068
    %v1171 = vunpack.c.h.b16 %v1068
    %v1172 = vunpack.c.l.b16 %v1069
    %v1173 = vunpack.c.h.b16 %v1069
    %v1174 = vunpack.c.l.b16 %v1070
    %v1175 = vunpack.c.h.b16 %v1070
    %v1176 = vunpack.c.l.b16 %v1071
    %v1177 = vunpack.c.h.b16 %v1071
    %v1178 = vunpack.c.l.b16 %v1072
    %v1179 = vunpack.c.h.b16 %v1072
    %v1180 = vunpack.c.l.b16 %v1073
    %v1181 = vunpack.c.h.b16 %v1073
    %v1182 = vpack.c.b16 %v1120, %v1118
    %v1183 = vpack.c.b16 %v1121, %v1119
    %v1184 = vpack.c.b16 %v1124, %v1122
    %v1185 = vpack.c.b16 %v1125, %v1123
    %v1186 = vpack.c.b16 %v1128, %v1126
    %v1187 = vpack.c.b16 %v1129, %v1127
    %v1188 = vpack.c.b16 %v1132, %v1130
    %v1189 = vpack.c.b16 %v1133, %v1131
    %v1190 = vpack.c.b16 %v1136, %v1134
    %v1191 = vpack.c.b16 %v1137, %v1135
    %v1192 = vpack.c.b16 %v1140, %v1138
    %v1193 = vpack.c.b16 %v1141, %v1139
    %v1194 = vpack.c.b16 %v1144, %v1142
    %v1195 = vpack.c.b16 %v1145, %v1143
    %v1196 = vpack.c.b16 %v1148, %v1146
    %v1197 = vpack.c.b16 %v1149, %v1147
    %v1198 = vpack.c.b16 %v1152, %v1150
    %v1199 = vpack.c.b16 %v1153, %v1151
    %v1200 = vpack.c.b16 %v1156, %v1154
    %v1201 = vpack.c.b16 %v1157, %v1155
    %v1202 = vpack.c.b16 %v1160, %v1158
    %v1203 = vpack.c.b16 %v1161, %v1159
    %v1204 = vpack.c.b16 %v1164, %v1162
    %v1205 = vpack.c.b16 %v1165, %v1163
    %v1206 = vpack.c.b16 %v1168, %v1166
    %v1207 = vpack.c.b16 %v1169, %v1167
    %v1208 = vpack.c.b16 %v1172, %v1170
    %v1209 = vpack.c.b16 %v1173, %v1171
    %v1210 = vpack.c.b16 %v1176, %v1174
    %v1211 = vpack.c.b16 %v1177, %v1175
    %v1212 = vpack.c.b16 %v1180, %v1178
    %v1213 = vpack.c.b16 %v1181, %v1179
    %1246 = vmatprep.subr.bf16.mxu0 %v1183
    %1247 = vmatpush1.bf16.msra.mxu0 %v1182
    %1248 = vmatprep.subr.bf16.mxu0 %v1185
    %1249 = vmatpush1.bf16.msra.mxu0 %v1184
    %1250 = vmatprep.subr.bf16.mxu0 %v1187
    %1251 = vmatpush1.bf16.msra.mxu0 %v1186
    %1252 = vmatprep.subr.bf16.mxu0 %v1189
    %1253 = vmatpush1.bf16.msra.mxu0 %v1188
    %1254 = vmatprep.subr.bf16.mxu0 %v1191
    %1255 = vmatpush1.bf16.msra.mxu0 %v1190
    %1256 = vmatprep.subr.bf16.mxu0 %v1193
    %1257 = vmatpush1.bf16.msra.mxu0 %v1192
    %1258 = vmatprep.subr.bf16.mxu0 %v1195
    %1259 = vmatpush1.bf16.msra.mxu0 %v1194
    %1260 = vmatprep.subr.bf16.mxu0 %v1197
    %1261 = vmatpush1.bf16.msra.mxu0 %v1196
    %1262 = vmatprep.subr.bf16.mxu0 %v1199
    %1263 = vmatpush1.bf16.msra.mxu0 %v1198
    %1264 = vmatprep.subr.bf16.mxu0 %v1201
    %1265 = vmatpush1.bf16.msra.mxu0 %v1200
    %1266 = vmatprep.subr.bf16.mxu0 %v1203
    %1267 = vmatpush1.bf16.msra.mxu0 %v1202
    %1268 = vmatprep.subr.bf16.mxu0 %v1205
    %1269 = vmatpush1.bf16.msra.mxu0 %v1204
    %1270 = vmatprep.subr.bf16.mxu0 %v1207
    %1271 = vmatpush1.bf16.msra.mxu0 %v1206
    %1272 = vmatprep.subr.bf16.mxu0 %v1209
    %1273 = vmatpush1.bf16.msra.mxu0 %v1208
    %1274 = vmatprep.subr.bf16.mxu0 %v1211
    %1275 = vmatpush1.bf16.msra.mxu0 %v1210
    %1276 = vmatprep.subr.bf16.mxu0 %v1213
    %1277 = vmatpush1.bf16.msra.mxu0 %v1212
    %1278 = vmatprep.mubr.bf16.mxu0 %v1011
    %1279 = vmatmul.mubr.bf16.gmra.mrb[0].mxu0 %v1010
    %v1280 = vpop.f32.mrb[0].mxu0
    %v1281 = vadd.f32 %v1079, %v1280
    %v1282 = vpop.f32.mrb[0].mxu0
    %v1283 = vadd.f32 %v1083, %v1282
    %v1284 = vpop.f32.mrb[0].mxu0
    %v1285 = vadd.f32 %v1079, %v1284
    %v1286 = vpop.f32.mrb[0].mxu0
    %v1287 = vadd.f32 %v1083, %v1286
    %1288 = vmatprep.mubr.bf16.mxu0 %v1013
    %1289 = vmatmul.mubr.bf16.gmra.mrb[0].mxu0 %v1012
    %v1290 = vpop.f32.mrb[0].mxu0
    %v1291 = vadd.f32 %v1079, %v1290
    %v1292 = vpop.f32.mrb[0].mxu0
    %v1293 = vadd.f32 %v1083, %v1292
    %v1294 = vpop.f32.mrb[0].mxu0
    %v1295 = vadd.f32 %v1079, %v1294
    %v1296 = vpop.f32.mrb[0].mxu0
    %v1297 = vadd.f32 %v1083, %v1296
    %1298 = vmatprep.mubr.bf16.mxu0 %v1015
    %1299 = vmatmul.mubr.bf16.gmra.mrb[0].mxu0 %v1014
    %v1300 = vpop.f32.mrb[0].mxu0
    %v1301 = vadd.f32 %v1079, %v1300
    %v1302 = vpop.f32.mrb[0].mxu0
    %v1303 = vadd.f32 %v1083, %v1302
    %v1304 = vpop.f32.mrb[0].mxu0
    %v1305 = vadd.f32 %v1079, %v1304
    %v1306 = vpop.f32.mrb[0].mxu0
    %v1307 = vadd.f32 %v1083, %v1306
    %1308 = vmatprep.mubr.bf16.mxu0 %v1017
    %1309 = vmatmul.mubr.bf16.gmra.mrb[0].mxu0 %v1016
    %v1310 = vpop.f32.mrb[0].mxu0
    %v1311 = vadd.f32 %v1079, %v1310
    %v1312 = vpop.f32.mrb[0].mxu0
    %v1313 = vadd.f32 %v1083, %v1312
    %v1314 = vpop.f32.mrb[0].mxu0
    %v1315 = vadd.f32 %v1079, %v1314
    %v1316 = vpop.f32.mrb[0].mxu0
    %v1317 = vadd.f32 %v1083, %v1316
    %1318 = vmatprep.mubr.bf16.mxu0 %v1019
    %1319 = vmatmul.mubr.bf16.gmra.mrb[0].mxu0 %v1018
    %v1320 = vpop.f32.mrb[0].mxu0
    %v1321 = vadd.f32 %v1079, %v1320
    %v1322 = vpop.f32.mrb[0].mxu0
    %v1323 = vadd.f32 %v1083, %v1322
    %v1324 = vpop.f32.mrb[0].mxu0
    %v1325 = vadd.f32 %v1079, %v1324
    %v1326 = vpop.f32.mrb[0].mxu0
    %v1327 = vadd.f32 %v1083, %v1326
    %1328 = vmatprep.mubr.bf16.mxu0 %v1021
    %1329 = vmatmul.mubr.bf16.gmra.mrb[0].mxu0 %v1020
    %v1330 = vpop.f32.mrb[0].mxu0
    %v1331 = vadd.f32 %v1079, %v1330
    %v1332 = vpop.f32.mrb[0].mxu0
    %v1333 = vadd.f32 %v1083, %v1332
    %v1334 = vpop.f32.mrb[0].mxu0
    %v1335 = vadd.f32 %v1079, %v1334
    %v1336 = vpop.f32.mrb[0].mxu0
    %v1337 = vadd.f32 %v1083, %v1336
    %1338 = vmatprep.mubr.bf16.mxu0 %v1023
    %1339 = vmatmul.mubr.bf16.gmra.mrb[0].mxu0 %v1022
    %v1340 = vpop.f32.mrb[0].mxu0
    %v1341 = vadd.f32 %v1079, %v1340
    %v1342 = vpop.f32.mrb[0].mxu0
    %v1343 = vadd.f32 %v1083, %v1342
    %v1344 = vpop.f32.mrb[0].mxu0
    %v1345 = vadd.f32 %v1079, %v1344
    %v1346 = vpop.f32.mrb[0].mxu0
    %v1347 = vadd.f32 %v1083, %v1346
    %1348 = vmatprep.mubr.bf16.mxu0 %v1025
    %1349 = vmatmul.mubr.bf16.gmra.mrb[0].mxu0 %v1024
    %v1350 = vpop.f32.mrb[0].mxu0
    %v1351 = vadd.f32 %v1079, %v1350
    %v1352 = vpop.f32.mrb[0].mxu0
    %v1353 = vadd.f32 %v1083, %v1352
    %v1354 = vpop.f32.mrb[0].mxu0
    %v1355 = vadd.f32 %v1079, %v1354
    %v1356 = vpop.f32.mrb[0].mxu0
    %v1357 = vadd.f32 %v1083, %v1356
    %1358 = vmatprep.mubr.bf16.mxu0 %v1027
    %1359 = vmatmul.mubr.bf16.gmra.mrb[0].mxu0 %v1026
    %v1360 = vpop.f32.mrb[0].mxu0
    %v1361 = vadd.f32 %v1079, %v1360
    %v1362 = vpop.f32.mrb[0].mxu0
    %v1363 = vadd.f32 %v1083, %v1362
    %v1364 = vpop.f32.mrb[0].mxu0
    %v1365 = vadd.f32 %v1079, %v1364
    %v1366 = vpop.f32.mrb[0].mxu0
    %v1367 = vadd.f32 %v1083, %v1366
    %1368 = vmatprep.mubr.bf16.mxu0 %v1029
    %1369 = vmatmul.mubr.bf16.gmra.mrb[0].mxu0 %v1028
    %v1370 = vpop.f32.mrb[0].mxu0
    %v1371 = vadd.f32 %v1079, %v1370
    %v1372 = vpop.f32.mrb[0].mxu0
    %v1373 = vadd.f32 %v1083, %v1372
    %v1374 = vpop.f32.mrb[0].mxu0
    %v1375 = vadd.f32 %v1079, %v1374
    %v1376 = vpop.f32.mrb[0].mxu0
    %v1377 = vadd.f32 %v1083, %v1376
    %1378 = vmatprep.mubr.bf16.mxu0 %v1031
    %1379 = vmatmul.mubr.bf16.gmra.mrb[0].mxu0 %v1030
    %v1380 = vpop.f32.mrb[0].mxu0
    %v1381 = vadd.f32 %v1079, %v1380
    %v1382 = vpop.f32.mrb[0].mxu0
    %v1383 = vadd.f32 %v1083, %v1382
    %v1384 = vpop.f32.mrb[0].mxu0
    %v1385 = vadd.f32 %v1079, %v1384
    %v1386 = vpop.f32.mrb[0].mxu0
    %v1387 = vadd.f32 %v1083, %v1386
    %1388 = vmatprep.mubr.bf16.mxu0 %v1033
    %1389 = vmatmul.mubr.bf16.gmra.mrb[0].mxu0 %v1032
    %v1390 = vpop.f32.mrb[0].mxu0
    %v1391 = vadd.f32 %v1079, %v1390
    %v1392 = vpop.f32.mrb[0].mxu0
    %v1393 = vadd.f32 %v1083, %v1392
    %v1394 = vpop.f32.mrb[0].mxu0
    %v1395 = vadd.f32 %v1079, %v1394
    %v1396 = vpop.f32.mrb[0].mxu0
    %v1397 = vadd.f32 %v1083, %v1396
    %1398 = vmatprep.mubr.bf16.mxu0 %v1035
    %1399 = vmatmul.mubr.bf16.gmra.mrb[0].mxu0 %v1034
    %v1400 = vpop.f32.mrb[0].mxu0
    %v1401 = vadd.f32 %v1079, %v1400
    %v1402 = vpop.f32.mrb[0].mxu0
    %v1403 = vadd.f32 %v1083, %v1402
    %v1404 = vpop.f32.mrb[0].mxu0
    %v1405 = vadd.f32 %v1079, %v1404
    %v1406 = vpop.f32.mrb[0].mxu0
    %v1407 = vadd.f32 %v1083, %v1406
    %1408 = vmatprep.mubr.bf16.mxu0 %v1037
    %1409 = vmatmul.mubr.bf16.gmra.mrb[0].mxu0 %v1036
    %v1410 = vpop.f32.mrb[0].mxu0
    %v1411 = vadd.f32 %v1079, %v1410
    %v1412 = vpop.f32.mrb[0].mxu0
    %v1413 = vadd.f32 %v1083, %v1412
    %v1414 = vpop.f32.mrb[0].mxu0
    %v1415 = vadd.f32 %v1079, %v1414
    %v1416 = vpop.f32.mrb[0].mxu0
    %v1417 = vadd.f32 %v1083, %v1416
    %1418 = vmatprep.mubr.bf16.mxu0 %v1039
    %1419 = vmatmul.mubr.bf16.gmra.mrb[0].mxu0 %v1038
    %v1420 = vpop.f32.mrb[0].mxu0
    %v1421 = vadd.f32 %v1079, %v1420
    %v1422 = vpop.f32.mrb[0].mxu0
    %v1423 = vadd.f32 %v1083, %v1422
    %v1424 = vpop.f32.mrb[0].mxu0
    %v1425 = vadd.f32 %v1079, %v1424
    %v1426 = vpop.f32.mrb[0].mxu0
    %v1427 = vadd.f32 %v1083, %v1426
    %1428 = vmatprep.mubr.bf16.mxu0 %v1041
    %1429 = vmatmul.mubr.bf16.gmra.mrb[0].mxu0 %v1040
    %v1430 = vpop.f32.mrb[0].mxu0
    %v1431 = vadd.f32 %v1079, %v1430
    %v1432 = vpop.f32.mrb[0].mxu0
    %v1433 = vadd.f32 %v1083, %v1432
    %v1434 = vpop.f32.mrb[0].mxu0
    %v1435 = vadd.f32 %v1079, %v1434
    %v1436 = vpop.f32.mrb[0].mxu0
    %v1437 = vadd.f32 %v1083, %v1436
    %1438 = vdwg.mxu0
    %v1439 = vadd.f32 %v1281, 3.0
    %v1440 = vadd.f32 %v1283, 3.0
    %v1441 = vadd.f32 %v1285, 3.0
    %v1442 = vadd.f32 %v1287, 3.0
    %v1443 = vadd.f32 %v1291, 3.0
    %v1444 = vadd.f32 %v1293, 3.0
    %v1445 = vadd.f32 %v1295, 3.0
    %v1446 = vadd.f32 %v1297, 3.0
    %v1447 = vadd.f32 %v1301, 3.0
    %v1448 = vadd.f32 %v1303, 3.0
    %v1449 = vadd.f32 %v1305, 3.0
    %v1450 = vadd.f32 %v1307, 3.0
    %v1451 = vadd.f32 %v1311, 3.0
    %v1452 = vadd.f32 %v1313, 3.0
    %v1453 = vadd.f32 %v1315, 3.0
    %v1454 = vadd.f32 %v1317, 3.0
    %v1455 = vadd.f32 %v1321, 3.0
    %v1456 = vadd.f32 %v1323, 3.0
    %v1457 = vadd.f32 %v1325, 3.0
    %v1458 = vadd.f32 %v1327, 3.0
    %v1459 = vadd.f32 %v1331, 3.0
    %v1460 = vadd.f32 %v1333, 3.0
    %v1461 = vadd.f32 %v1335, 3.0
    %v1462 = vadd.f32 %v1337, 3.0
    %v1463 = vadd.f32 %v1341, 3.0
    %v1464 = vadd.f32 %v1343, 3.0
    %v1465 = vadd.f32 %v1345, 3.0
    %v1466 = vadd.f32 %v1347, 3.0
    %v1467 = vadd.f32 %v1351, 3.0
    %v1468 = vadd.f32 %v1353, 3.0
    %v1469 = vadd.f32 %v1355, 3.0
    %v1470 = vadd.f32 %v1357, 3.0
    %v1471 = vadd.f32 %v1361, 3.0
    %v1472 = vadd.f32 %v1363, 3.0
    %v1473 = vadd.f32 %v1365, 3.0
    %v1474 = vadd.f32 %v1367, 3.0
    %v1475 = vadd.f32 %v1371, 3.0
    %v1476 = vadd.f32 %v1373, 3.0
    %v1477 = vadd.f32 %v1375, 3.0
    %v1478 = vadd.f32 %v1377, 3.0
    %v1479 = vadd.f32 %v1381, 3.0
    %v1480 = vadd.f32 %v1383, 3.0
    %v1481 = vadd.f32 %v1385, 3.0
    %v1482 = vadd.f32 %v1387, 3.0
    %v1483 = vadd.f32 %v1391, 3.0
    %v1484 = vadd.f32 %v1393, 3.0
    %v1485 = vadd.f32 %v1395, 3.0
    %v1486 = vadd.f32 %v1397, 3.0
    %v1487 = vadd.f32 %v1401, 3.0
    %v1488 = vadd.f32 %v1403, 3.0
    %v1489 = vadd.f32 %v1405, 3.0
    %v1490 = vadd.f32 %v1407, 3.0
    %v1491 = vadd.f32 %v1411, 3.0
    %v1492 = vadd.f32 %v1413, 3.0
    %v1493 = vadd.f32 %v1415, 3.0
    %v1494 = vadd.f32 %v1417, 3.0
    %v1495 = vadd.f32 %v1421, 3.0
    %v1496 = vadd.f32 %v1423, 3.0
    %v1497 = vadd.f32 %v1425, 3.0
    %v1498 = vadd.f32 %v1427, 3.0
    %v1499 = vadd.f32 %v1431, 3.0
    %v1500 = vadd.f32 %v1433, 3.0
    %v1501 = vadd.f32 %v1435, 3.0
    %v1502 = vadd.f32 %v1437, 3.0
    %v1503 = vmax.f32 %v1439, 0.0
    %v1504 = vmax.f32 %v1440, 0.0
    %v1505 = vmax.f32 %v1441, 0.0
    %v1506 = vmax.f32 %v1442, 0.0
    %v1507 = vmax.f32 %v1443, 0.0
    %v1508 = vmax.f32 %v1444, 0.0
    %v1509 = vmax.f32 %v1445, 0.0
    %v1510 = vmax.f32 %v1446, 0.0
    %v1511 = vmax.f32 %v1447, 0.0
    %v1512 = vmax.f32 %v1448, 0.0
    %v1513 = vmax.f32 %v1449, 0.0
    %v1514 = vmax.f32 %v1450, 0.0
    %v1515 = vmax.f32 %v1451, 0.0
    %v1516 = vmax.f32 %v1452, 0.0
    %v1517 = vmax.f32 %v1453, 0.0
    %v1518 = vmax.f32 %v1454, 0.0
    %v1519 = vmax.f32 %v1455, 0.0
    %v1520 = vmax.f32 %v1456, 0.0
    %v1521 = vmax.f32 %v1457, 0.0
    %v1522 = vmax.f32 %v1458, 0.0
    %v1523 = vmax.f32 %v1459, 0.0
    %v1524 = vmax.f32 %v1460, 0.0
    %v1525 = vmax.f32 %v1461, 0.0
    %v1526 = vmax.f32 %v1462, 0.0
    %v1527 = vmax.f32 %v1463, 0.0
    %v1528 = vmax.f32 %v1464, 0.0
    %v1529 = vmax.f32 %v1465, 0.0
    %v1530 = vmax.f32 %v1466, 0.0
    %v1531 = vmax.f32 %v1467, 0.0
    %v1532 = vmax.f32 %v1468, 0.0
    %v1533 = vmax.f32 %v1469, 0.0
    %v1534 = vmax.f32 %v1470, 0.0
    %v1535 = vmax.f32 %v1471, 0.0
    %v1536 = vmax.f32 %v1472, 0.0
    %v1537 = vmax.f32 %v1473, 0.0
    %v1538 = vmax.f32 %v1474, 0.0
    %v1539 = vmax.f32 %v1475, 0.0
    %v1540 = vmax.f32 %v1476, 0.0
    %v1541 = vmax.f32 %v1477, 0.0
    %v1542 = vmax.f32 %v1478, 0.0
    %v1543 = vmax.f32 %v1479, 0.0
    %v1544 = vmax.f32 %v1480, 0.0
    %v1545 = vmax.f32 %v1481, 0.0
    %v1546 = vmax.f32 %v1482, 0.0
    %v1547 = vmax.f32 %v1483, 0.0
    %v1548 = vmax.f32 %v1484, 0.0
    %v1549 = vmax.f32 %v1485, 0.0
    %v1550 = vmax.f32 %v1486, 0.0
    %v1551 = vmax.f32 %v1487, 0.0
    %v1552 = vmax.f32 %v1488, 0.0
    %v1553 = vmax.f32 %v1489, 0.0
    %v1554 = vmax.f32 %v1490, 0.0
    %v1555 = vmax.f32 %v1491, 0.0
    %v1556 = vmax.f32 %v1492, 0.0
    %v1557 = vmax.f32 %v1493, 0.0
    %v1558 = vmax.f32 %v1494, 0.0
    %v1559 = vmax.f32 %v1495, 0.0
    %v1560 = vmax.f32 %v1496, 0.0
    %v1561 = vmax.f32 %v1497, 0.0
    %v1562 = vmax.f32 %v1498, 0.0
    %v1563 = vmax.f32 %v1499, 0.0
    %v1564 = vmax.f32 %v1500, 0.0
    %v1565 = vmax.f32 %v1501, 0.0
    %v1566 = vmax.f32 %v1502, 0.0
    %v1567 = vmin.f32 %v1503, 6.0
    %v1568 = vmin.f32 %v1504, 6.0
    %v1569 = vmin.f32 %v1505, 6.0
    %v1570 = vmin.f32 %v1506, 6.0
    %v1571 = vmin.f32 %v1507, 6.0
    %v1572 = vmin.f32 %v1508, 6.0
    %v1573 = vmin.f32 %v1509, 6.0
    %v1574 = vmin.f32 %v1510, 6.0
    %v1575 = vmin.f32 %v1511, 6.0
    %v1576 = vmin.f32 %v1512, 6.0
    %v1577 = vmin.f32 %v1513, 6.0
    %v1578 = vmin.f32 %v1514, 6.0
    %v1579 = vmin.f32 %v1515, 6.0
    %v1580 = vmin.f32 %v1516, 6.0
    %v1581 = vmin.f32 %v1517, 6.0
    %v1582 = vmin.f32 %v1518, 6.0
    %v1583 = vmin.f32 %v1519, 6.0
    %v1584 = vmin.f32 %v1520, 6.0
    %v1585 = vmin.f32 %v1521, 6.0
    %v1586 = vmin.f32 %v1522, 6.0
    %v1587 = vmin.f32 %v1523, 6.0
    %v1588 = vmin.f32 %v1524, 6.0
    %v1589 = vmin.f32 %v1525, 6.0
    %v1590 = vmin.f32 %v1526, 6.0
    %v1591 = vmin.f32 %v1527, 6.0
    %v1592 = vmin.f32 %v1528, 6.0
    %v1593 = vmin.f32 %v1529, 6.0
    %v1594 = vmin.f32 %v1530, 6.0
    %v1595 = vmin.f32 %v1531, 6.0
    %v1596 = vmin.f32 %v1532, 6.0
    %v1597 = vmin.f32 %v1533, 6.0
    %v1598 = vmin.f32 %v1534, 6.0
    %v1599 = vmin.f32 %v1535, 6.0
    %v1600 = vmin.f32 %v1536, 6.0
    %v1601 = vmin.f32 %v1537, 6.0
    %v1602 = vmin.f32 %v1538, 6.0
    %v1603 = vmin.f32 %v1539, 6.0
    %v1604 = vmin.f32 %v1540, 6.0
    %v1605 = vmin.f32 %v1541, 6.0
    %v1606 = vmin.f32 %v1542, 6.0
    %v1607 = vmin.f32 %v1543, 6.0
    %v1608 = vmin.f32 %v1544, 6.0
    %v1609 = vmin.f32 %v1545, 6.0
    %v1610 = vmin.f32 %v1546, 6.0
    %v1611 = vmin.f32 %v1547, 6.0
    %v1612 = vmin.f32 %v1548, 6.0
    %v1613 = vmin.f32 %v1549, 6.0
    %v1614 = vmin.f32 %v1550, 6.0
    %v1615 = vmin.f32 %v1551, 6.0
    %v1616 = vmin.f32 %v1552, 6.0
    %v1617 = vmin.f32 %v1553, 6.0
    %v1618 = vmin.f32 %v1554, 6.0
    %v1619 = vmin.f32 %v1555, 6.0
    %v1620 = vmin.f32 %v1556, 6.0
    %v1621 = vmin.f32 %v1557, 6.0
    %v1622 = vmin.f32 %v1558, 6.0
    %v1623 = vmin.f32 %v1559, 6.0
    %v1624 = vmin.f32 %v1560, 6.0
    %v1625 = vmin.f32 %v1561, 6.0
    %v1626 = vmin.f32 %v1562, 6.0
    %v1627 = vmin.f32 %v1563, 6.0
    %v1628 = vmin.f32 %v1564, 6.0
    %v1629 = vmin.f32 %v1565, 6.0
    %v1630 = vmin.f32 %v1566, 6.0
    %v1631 = vmul.f32 %v1281, %v1567
    %v1632 = vmul.f32 %v1283, %v1568
    %v1633 = vmul.f32 %v1285, %v1569
    %v1634 = vmul.f32 %v1287, %v1570
    %v1635 = vmul.f32 %v1291, %v1571
    %v1636 = vmul.f32 %v1293, %v1572
    %v1637 = vmul.f32 %v1295, %v1573
    %v1638 = vmul.f32 %v1297, %v1574
    %v1639 = vmul.f32 %v1301, %v1575
    %v1640 = vmul.f32 %v1303, %v1576
    %v1641 = vmul.f32 %v1305, %v1577
    %v1642 = vmul.f32 %v1307, %v1578
    %v1643 = vmul.f32 %v1311, %v1579
    %v1644 = vmul.f32 %v1313, %v1580
    %v1645 = vmul.f32 %v1315, %v1581
    %v1646 = vmul.f32 %v1317, %v1582
    %v1647 = vmul.f32 %v1321, %v1583
    %v1648 = vmul.f32 %v1323, %v1584
    %v1649 = vmul.f32 %v1325, %v1585
    %v1650 = vmul.f32 %v1327, %v1586
    %v1651 = vmul.f32 %v1331, %v1587
    %v1652 = vmul.f32 %v1333, %v1588
    %v1653 = vmul.f32 %v1335, %v1589
    %v1654 = vmul.f32 %v1337, %v1590
    %v1655 = vmul.f32 %v1341, %v1591
    %v1656 = vmul.f32 %v1343, %v1592
    %v1657 = vmul.f32 %v1345, %v1593
    %v1658 = vmul.f32 %v1347, %v1594
    %v1659 = vmul.f32 %v1351, %v1595
    %v1660 = vmul.f32 %v1353, %v1596
    %v1661 = vmul.f32 %v1355, %v1597
    %v1662 = vmul.f32 %v1357, %v1598
    %v1663 = vmul.f32 %v1361, %v1599
    %v1664 = vmul.f32 %v1363, %v1600
    %v1665 = vmul.f32 %v1365, %v1601
    %v1666 = vmul.f32 %v1367, %v1602
    %v1667 = vmul.f32 %v1371, %v1603
    %v1668 = vmul.f32 %v1373, %v1604
    %v1669 = vmul.f32 %v1375, %v1605
    %v1670 = vmul.f32 %v1377, %v1606
    %v1671 = vmul.f32 %v1381, %v1607
    %v1672 = vmul.f32 %v1383, %v1608
    %v1673 = vmul.f32 %v1385, %v1609
    %v1674 = vmul.f32 %v1387, %v1610
    %v1675 = vmul.f32 %v1391, %v1611
    %v1676 = vmul.f32 %v1393, %v1612
    %v1677 = vmul.f32 %v1395, %v1613
    %v1678 = vmul.f32 %v1397, %v1614
    %v1679 = vmul.f32 %v1401, %v1615
    %v1680 = vmul.f32 %v1403, %v1616
    %v1681 = vmul.f32 %v1405, %v1617
    %v1682 = vmul.f32 %v1407, %v1618
    %v1683 = vmul.f32 %v1411, %v1619
    %v1684 = vmul.f32 %v1413, %v1620
    %v1685 = vmul.f32 %v1415, %v1621
    %v1686 = vmul.f32 %v1417, %v1622
    %v1687 = vmul.f32 %v1421, %v1623
    %v1688 = vmul.f32 %v1423, %v1624
    %v1689 = vmul.f32 %v1425, %v1625
    %v1690 = vmul.f32 %v1427, %v1626
    %v1691 = vmul.f32 %v1431, %v1627
    %v1692 = vmul.f32 %v1433, %v1628
    %v1693 = vmul.f32 %v1435, %v1629
    %v1694 = vmul.f32 %v1437, %v1630
    %v1695 = vmul.f32 %v1631, 0.16666667
    %v1696 = vmul.f32 %v1632, 0.16666667
    %v1697 = vmul.f32 %v1633, 0.16666667
    %v1698 = vmul.f32 %v1634, 0.16666667
    %v1699 = vmul.f32 %v1635, 0.16666667
    %v1700 = vmul.f32 %v1636, 0.16666667
    %v1701 = vmul.f32 %v1637, 0.16666667
    %v1702 = vmul.f32 %v1638, 0.16666667
    %v1703 = vmul.f32 %v1639, 0.16666667
    %v1704 = vmul.f32 %v1640, 0.16666667
    %v1705 = vmul.f32 %v1641, 0.16666667
    %v1706 = vmul.f32 %v1642, 0.16666667
    %v1707 = vmul.f32 %v1643, 0.16666667
    %v1708 = vmul.f32 %v1644, 0.16666667
    %v1709 = vmul.f32 %v1645, 0.16666667
    %v1710 = vmul.f32 %v1646, 0.16666667
    %v1711 = vmul.f32 %v1647, 0.16666667
    %v1712 = vmul.f32 %v1648, 0.16666667
    %v1713 = vmul.f32 %v1649, 0.16666667
    %v1714 = vmul.f32 %v1650, 0.16666667
    %v1715 = vmul.f32 %v1651, 0.16666667
    %v1716 = vmul.f32 %v1652, 0.16666667
    %v1717 = vmul.f32 %v1653, 0.16666667
    %v1718 = vmul.f32 %v1654, 0.16666667
    %v1719 = vmul.f32 %v1655, 0.16666667
    %v1720 = vmul.f32 %v1656, 0.16666667
    %v1721 = vmul.f32 %v1657, 0.16666667
    %v1722 = vmul.f32 %v1658, 0.16666667
    %v1723 = vmul.f32 %v1659, 0.16666667
    %v1724 = vmul.f32 %v1660, 0.16666667
    %v1725 = vmul.f32 %v1661, 0.16666667
    %v1726 = vmul.f32 %v1662, 0.16666667
    %v1727 = vmul.f32 %v1663, 0.16666667
    %v1728 = vmul.f32 %v1664, 0.16666667
    %v1729 = vmul.f32 %v1665, 0.16666667
    %v1730 = vmul.f32 %v1666, 0.16666667
    %v1731 = vmul.f32 %v1667, 0.16666667
    %v1732 = vmul.f32 %v1668, 0.16666667
    %v1733 = vmul.f32 %v1669, 0.16666667
    %v1734 = vmul.f32 %v1670, 0.16666667
    %v1735 = vmul.f32 %v1671, 0.16666667
    %v1736 = vmul.f32 %v1672, 0.16666667
    %v1737 = vmul.f32 %v1673, 0.16666667
    %v1738 = vmul.f32 %v1674, 0.16666667
    %v1739 = vmul.f32 %v1675, 0.16666667
    %v1740 = vmul.f32 %v1676, 0.16666667
    %v1741 = vmul.f32 %v1677, 0.16666667
    %v1742 = vmul.f32 %v1678, 0.16666667
    %v1743 = vmul.f32 %v1679, 0.16666667
    %v1744 = vmul.f32 %v1680, 0.16666667
    %v1745 = vmul.f32 %v1681, 0.16666667
    %v1746 = vmul.f32 %v1682, 0.16666667
    %v1747 = vmul.f32 %v1683, 0.16666667
    %v1748 = vmul.f32 %v1684, 0.16666667
    %v1749 = vmul.f32 %v1685, 0.16666667
    %v1750 = vmul.f32 %v1686, 0.16666667
    %v1751 = vmul.f32 %v1687, 0.16666667
    %v1752 = vmul.f32 %v1688, 0.16666667
    %v1753 = vmul.f32 %v1689, 0.16666667
    %v1754 = vmul.f32 %v1690, 0.16666667
    %v1755 = vmul.f32 %v1691, 0.16666667
    %v1756 = vmul.f32 %v1692, 0.16666667
    %v1757 = vmul.f32 %v1693, 0.16666667
    %v1758 = vmul.f32 %v1694, 0.16666667
    %v1759 = vpack.c.bf16 %v1697, %v1695
    %v1760 = vpack.c.bf16 %v1698, %v1696
    %v1761 = vpack.c.bf16 %v1701, %v1699
    %v1762 = vpack.c.bf16 %v1702, %v1700
    %v1763 = vpack.c.bf16 %v1705, %v1703
    %v1764 = vpack.c.bf16 %v1706, %v1704
    %v1765 = vpack.c.bf16 %v1709, %v1707
    %v1766 = vpack.c.bf16 %v1710, %v1708
    %v1767 = vpack.c.bf16 %v1713, %v1711
    %v1768 = vpack.c.bf16 %v1714, %v1712
    %v1769 = vpack.c.bf16 %v1717, %v1715
    %v1770 = vpack.c.bf16 %v1718, %v1716
    %v1771 = vpack.c.bf16 %v1721, %v1719
    %v1772 = vpack.c.bf16 %v1722, %v1720
    %v1773 = vpack.c.bf16 %v1725, %v1723
    %v1774 = vpack.c.bf16 %v1726, %v1724
    %v1775 = vpack.c.bf16 %v1729, %v1727
    %v1776 = vpack.c.bf16 %v1730, %v1728
    %v1777 = vpack.c.bf16 %v1733, %v1731
    %v1778 = vpack.c.bf16 %v1734, %v1732
    %v1779 = vpack.c.bf16 %v1737, %v1735
    %v1780 = vpack.c.bf16 %v1738, %v1736
    %v1781 = vpack.c.bf16 %v1741, %v1739
    %v1782 = vpack.c.bf16 %v1742, %v1740
    %v1783 = vpack.c.bf16 %v1745, %v1743
    %v1784 = vpack.c.bf16 %v1746, %v1744
    %v1785 = vpack.c.bf16 %v1749, %v1747
    %v1786 = vpack.c.bf16 %v1750, %v1748
    %v1787 = vpack.c.bf16 %v1753, %v1751
    %v1788 = vpack.c.bf16 %v1754, %v1752
    %v1789 = vpack.c.bf16 %v1757, %v1755
    %v1790 = vpack.c.bf16 %v1758, %v1756
    %v1791 = vld [vmem:[%s7] sm:$0xf]
    %v1792 = vld [vmem:[%s7 + $0x4] sm:$0xf]
    %v1793 = vld [vmem:[%s7 + $0x8] sm:$0xf]
    %v1794 = vld [vmem:[%s7 + $0xc] sm:$0xf]
    %v1795 = vld [vmem:[%s7 + $0x10] sm:$0xf]
    %v1796 = vld [vmem:[%s7 + $0x14] sm:$0xf]
    %v1797 = vld [vmem:[%s7 + $0x18] sm:$0xf]
    %v1798 = vld [vmem:[%s7 + $0x1c] sm:$0xf]
    %v1799 = vld [vmem:[%s7 + $0x20] sm:$0xf]
    %v1800 = vld [vmem:[%s7 + $0x24] sm:$0xf]
    %v1801 = vld [vmem:[%s7 + $0x28] sm:$0xf]
    %v1802 = vld [vmem:[%s7 + $0x2c] sm:$0xf]
    %v1803 = vld [vmem:[%s7 + $0x30] sm:$0xf]
    %v1804 = vld [vmem:[%s7 + $0x34] sm:$0xf]
    %v1805 = vld [vmem:[%s7 + $0x38] sm:$0xf]
    %v1806 = vld [vmem:[%s7 + $0x3c] sm:$0xf]
    %v1807 = vld [vmem:[%s7 + $0x40] sm:$0xf]
    %v1808 = vld [vmem:[%s7 + $0x44] sm:$0xf]
    %v1809 = vld [vmem:[%s7 + $0x48] sm:$0xf]
    %v1810 = vld [vmem:[%s7 + $0x4c] sm:$0xf]
    %v1811 = vld [vmem:[%s7 + $0x50] sm:$0xf]
    %v1812 = vld [vmem:[%s7 + $0x54] sm:$0xf]
    %v1813 = vld [vmem:[%s7 + $0x58] sm:$0xf]
    %v1814 = vld [vmem:[%s7 + $0x5c] sm:$0xf]
    %v1815 = vld [vmem:[%s7 + $0x60] sm:$0xf]
    %v1816 = vld [vmem:[%s7 + $0x64] sm:$0xf]
    %v1817 = vld [vmem:[%s7 + $0x68] sm:$0xf]
    %v1818 = vld [vmem:[%s7 + $0x6c] sm:$0xf]
    %v1819 = vld [vmem:[%s7 + $0x70] sm:$0xf]
    %v1820 = vld [vmem:[%s7 + $0x74] sm:$0xf]
    %v1821 = vld [vmem:[%s7 + $0x78] sm:$0xf]
    %v1822 = vld [vmem:[%s7 + $0x7c] sm:$0xf]
    %v1823 = vld [vmem:[%s8] sm:$0x1]
    %v1825 = vlaneseq
    %v1826 = vshrl.u32 %v1825, 7
    %v1827 = vsub.s32 0, %v1826
    %v1828 = vrot.slane %v1823, %v1827
    %v1862 = vunpack.c.l.b16 %v1791
    %v1863 = vunpack.c.l.b16 %v1792
    %v1864 = vunpack.c.l.b16 %v1793
    %v1865 = vunpack.c.l.b16 %v1794
    %v1866 = vunpack.c.l.b16 %v1795
    %v1867 = vunpack.c.l.b16 %v1796
    %v1868 = vunpack.c.l.b16 %v1797
    %v1869 = vunpack.c.l.b16 %v1798
    %v1870 = vunpack.c.l.b16 %v1799
    %v1871 = vunpack.c.l.b16 %v1800
    %v1872 = vunpack.c.l.b16 %v1801
    %v1873 = vunpack.c.l.b16 %v1802
    %v1874 = vunpack.c.l.b16 %v1803
    %v1875 = vunpack.c.l.b16 %v1804
    %v1876 = vunpack.c.l.b16 %v1805
    %v1877 = vunpack.c.l.b16 %v1806
    %v1878 = vunpack.c.l.b16 %v1807
    %v1879 = vunpack.c.l.b16 %v1808
    %v1880 = vunpack.c.l.b16 %v1809
    %v1881 = vunpack.c.l.b16 %v1810
    %v1882 = vunpack.c.l.b16 %v1811
    %v1883 = vunpack.c.l.b16 %v1812
    %v1884 = vunpack.c.l.b16 %v1813
    %v1885 = vunpack.c.l.b16 %v1814
    %v1886 = vunpack.c.l.b16 %v1815
    %v1887 = vunpack.c.l.b16 %v1816
    %v1888 = vunpack.c.l.b16 %v1817
    %v1889 = vunpack.c.l.b16 %v1818
    %v1890 = vunpack.c.l.b16 %v1819
    %v1891 = vunpack.c.l.b16 %v1820
    %v1892 = vunpack.c.l.b16 %v1821
    %v1893 = vunpack.c.l.b16 %v1822
    %v1894 = vpack.c.b16 %v1863, %v1862
    %v1895 = vpack.c.b16 %v1865, %v1864
    %v1896 = vpack.c.b16 %v1867, %v1866
    %v1897 = vpack.c.b16 %v1869, %v1868
    %v1898 = vpack.c.b16 %v1871, %v1870
    %v1899 = vpack.c.b16 %v1873, %v1872
    %v1900 = vpack.c.b16 %v1875, %v1874
    %v1901 = vpack.c.b16 %v1877, %v1876
    %v1902 = vpack.c.b16 %v1879, %v1878
    %v1903 = vpack.c.b16 %v1881, %v1880
    %v1904 = vpack.c.b16 %v1883, %v1882
    %v1905 = vpack.c.b16 %v1885, %v1884
    %v1906 = vpack.c.b16 %v1887, %v1886
    %v1907 = vpack.c.b16 %v1889, %v1888
    %v1908 = vpack.c.b16 %v1891, %v1890
    %v1909 = vpack.c.b16 %v1893, %v1892
    %1926 = vmatprep.subr.bf16.mxu0 0
    %1927 = vmatpush1.bf16.msra.mxu0 %v1894
    %1928 = vmatprep.subr.bf16.mxu0 0
    %1929 = vmatpush1.bf16.msra.mxu0 %v1895
    %1930 = vmatprep.subr.bf16.mxu0 0
    %1931 = vmatpush1.bf16.msra.mxu0 %v1896
    %1932 = vmatprep.subr.bf16.mxu0 0
    %1933 = vmatpush1.bf16.msra.mxu0 %v1897
    %1934 = vmatprep.subr.bf16.mxu0 0
    %1935 = vmatpush1.bf16.msra.mxu0 %v1898
    %1936 = vmatprep.subr.bf16.mxu0 0
    %1937 = vmatpush1.bf16.msra.mxu0 %v1899
    %1938 = vmatprep.subr.bf16.mxu0 0
    %1939 = vmatpush1.bf16.msra.mxu0 %v1900
    %1940 = vmatprep.subr.bf16.mxu0 0
    %1941 = vmatpush1.bf16.msra.mxu0 %v1901
    %1942 = vmatprep.subr.bf16.mxu0 0
    %1943 = vmatpush1.bf16.msra.mxu0 %v1902
    %1944 = vmatprep.subr.bf16.mxu0 0
    %1945 = vmatpush1.bf16.msra.mxu0 %v1903
    %1946 = vmatprep.subr.bf16.mxu0 0
    %1947 = vmatpush1.bf16.msra.mxu0 %v1904
    %1948 = vmatprep.subr.bf16.mxu0 0
    %1949 = vmatpush1.bf16.msra.mxu0 %v1905
    %1950 = vmatprep.subr.bf16.mxu0 0
    %1951 = vmatpush1.bf16.msra.mxu0 %v1906
    %1952 = vmatprep.subr.bf16.mxu0 0
    %1953 = vmatpush1.bf16.msra.mxu0 %v1907
    %1954 = vmatprep.subr.bf16.mxu0 0
    %1955 = vmatpush1.bf16.msra.mxu0 %v1908
    %1956 = vmatprep.subr.bf16.mxu0 0
    %1957 = vmatpush1.bf16.msra.mxu0 %v1909
    %1958 = vmatprep.mubr.bf16.mxu0 %v1760
    %1959 = vmatmul.mubr.bf16.gmra.mrb[0].mxu0 %v1759
    %v1960 = vpop.f32.mrb[0].mxu0
    %v1961 = vadd.f32 %v1828, %v1960
    %v1962 = vpop.f32.mrb[0].mxu0
    %v1963 = vpop.f32.mrb[0].mxu0
    %v1964 = vadd.f32 %v1828, %v1963
    %v1965 = vpop.f32.mrb[0].mxu0
    %1966 = vmatprep.mubr.bf16.mxu0 %v1762
    %1967 = vmatmul.mubr.bf16.gmra.mrb[0].mxu0 %v1761
    %v1968 = vpop.f32.mrb[0].mxu0
    %v1969 = vadd.f32 %v1828, %v1968
    %v1970 = vpop.f32.mrb[0].mxu0
    %v1971 = vpop.f32.mrb[0].mxu0
    %v1972 = vadd.f32 %v1828, %v1971
    %v1973 = vpop.f32.mrb[0].mxu0
    %1974 = vmatprep.mubr.bf16.mxu0 %v1764
    %1975 = vmatmul.mubr.bf16.gmra.mrb[0].mxu0 %v1763
    %v1976 = vpop.f32.mrb[0].mxu0
    %v1977 = vadd.f32 %v1828, %v1976
    %v1978 = vpop.f32.mrb[0].mxu0
    %v1979 = vpop.f32.mrb[0].mxu0
    %v1980 = vadd.f32 %v1828, %v1979
    %v1981 = vpop.f32.mrb[0].mxu0
    %1982 = vmatprep.mubr.bf16.mxu0 %v1766
    %1983 = vmatmul.mubr.bf16.gmra.mrb[0].mxu0 %v1765
    %v1984 = vpop.f32.mrb[0].mxu0
    %v1985 = vadd.f32 %v1828, %v1984
    %v1986 = vpop.f32.mrb[0].mxu0
    %v1987 = vpop.f32.mrb[0].mxu0
    %v1988 = vadd.f32 %v1828, %v1987
    %v1989 = vpop.f32.mrb[0].mxu0
    %1990 = vmatprep.mubr.bf16.mxu0 %v1768
    %1991 = vmatmul.mubr.bf16.gmra.mrb[0].mxu0 %v1767
    %v1992 = vpop.f32.mrb[0].mxu0
    %v1993 = vadd.f32 %v1828, %v1992
    %v1994 = vpop.f32.mrb[0].mxu0
    %v1995 = vpop.f32.mrb[0].mxu0
    %v1996 = vadd.f32 %v1828, %v1995
    %v1997 = vpop.f32.mrb[0].mxu0
    %1998 = vmatprep.mubr.bf16.mxu0 %v1770
    %1999 = vmatmul.mubr.bf16.gmra.mrb[0].mxu0 %v1769
    %v2000 = vpop.f32.mrb[0].mxu0
    %v2001 = vadd.f32 %v1828, %v2000
    %v2002 = vpop.f32.mrb[0].mxu0
    %v2003 = vpop.f32.mrb[0].mxu0
    %v2004 = vadd.f32 %v1828, %v2003
    %v2005 = vpop.f32.mrb[0].mxu0
    %2006 = vmatprep.mubr.bf16.mxu0 %v1772
    %2007 = vmatmul.mubr.bf16.gmra.mrb[0].mxu0 %v1771
    %v2008 = vpop.f32.mrb[0].mxu0
    %v2009 = vadd.f32 %v1828, %v2008
    %v2010 = vpop.f32.mrb[0].mxu0
    %v2011 = vpop.f32.mrb[0].mxu0
    %v2012 = vadd.f32 %v1828, %v2011
    %v2013 = vpop.f32.mrb[0].mxu0
    %2014 = vmatprep.mubr.bf16.mxu0 %v1774
    %2015 = vmatmul.mubr.bf16.gmra.mrb[0].mxu0 %v1773
    %v2016 = vpop.f32.mrb[0].mxu0
    %v2017 = vadd.f32 %v1828, %v2016
    %v2018 = vpop.f32.mrb[0].mxu0
    %v2019 = vpop.f32.mrb[0].mxu0
    %v2020 = vadd.f32 %v1828, %v2019
    %v2021 = vpop.f32.mrb[0].mxu0
    %2022 = vmatprep.mubr.bf16.mxu0 %v1776
    %2023 = vmatmul.mubr.bf16.gmra.mrb[0].mxu0 %v1775
    %v2024 = vpop.f32.mrb[0].mxu0
    %v2025 = vadd.f32 %v1828, %v2024
    %v2026 = vpop.f32.mrb[0].mxu0
    %v2027 = vpop.f32.mrb[0].mxu0
    %v2028 = vadd.f32 %v1828, %v2027
    %v2029 = vpop.f32.mrb[0].mxu0
    %2030 = vmatprep.mubr.bf16.mxu0 %v1778
    %2031 = vmatmul.mubr.bf16.gmra.mrb[0].mxu0 %v1777
    %v2032 = vpop.f32.mrb[0].mxu0
    %v2033 = vadd.f32 %v1828, %v2032
    %v2034 = vpop.f32.mrb[0].mxu0
    %v2035 = vpop.f32.mrb[0].mxu0
    %v2036 = vadd.f32 %v1828, %v2035
    %v2037 = vpop.f32.mrb[0].mxu0
    %2038 = vmatprep.mubr.bf16.mxu0 %v1780
    %2039 = vmatmul.mubr.bf16.gmra.mrb[0].mxu0 %v1779
    %v2040 = vpop.f32.mrb[0].mxu0
    %v2041 = vadd.f32 %v1828, %v2040
    %v2042 = vpop.f32.mrb[0].mxu0
    %v2043 = vpop.f32.mrb[0].mxu0
    %v2044 = vadd.f32 %v1828, %v2043
    %v2045 = vpop.f32.mrb[0].mxu0
    %2046 = vmatprep.mubr.bf16.mxu0 %v1782
    %2047 = vmatmul.mubr.bf16.gmra.mrb[0].mxu0 %v1781
    %v2048 = vpop.f32.mrb[0].mxu0
    %v2049 = vadd.f32 %v1828, %v2048
    %v2050 = vpop.f32.mrb[0].mxu0
    %v2051 = vpop.f32.mrb[0].mxu0
    %v2052 = vadd.f32 %v1828, %v2051
    %v2053 = vpop.f32.mrb[0].mxu0
    %2054 = vmatprep.mubr.bf16.mxu0 %v1784
    %2055 = vmatmul.mubr.bf16.gmra.mrb[0].mxu0 %v1783
    %v2056 = vpop.f32.mrb[0].mxu0
    %v2057 = vadd.f32 %v1828, %v2056
    %v2058 = vpop.f32.mrb[0].mxu0
    %v2059 = vpop.f32.mrb[0].mxu0
    %v2060 = vadd.f32 %v1828, %v2059
    %v2061 = vpop.f32.mrb[0].mxu0
    %2062 = vmatprep.mubr.bf16.mxu0 %v1786
    %2063 = vmatmul.mubr.bf16.gmra.mrb[0].mxu0 %v1785
    %v2064 = vpop.f32.mrb[0].mxu0
    %v2065 = vadd.f32 %v1828, %v2064
    %v2066 = vpop.f32.mrb[0].mxu0
    %v2067 = vpop.f32.mrb[0].mxu0
    %v2068 = vadd.f32 %v1828, %v2067
    %v2069 = vpop.f32.mrb[0].mxu0
    %2070 = vmatprep.mubr.bf16.mxu0 %v1788
    %2071 = vmatmul.mubr.bf16.gmra.mrb[0].mxu0 %v1787
    %v2072 = vpop.f32.mrb[0].mxu0
    %v2073 = vadd.f32 %v1828, %v2072
    %v2074 = vpop.f32.mrb[0].mxu0
    %v2075 = vpop.f32.mrb[0].mxu0
    %v2076 = vadd.f32 %v1828, %v2075
    %v2077 = vpop.f32.mrb[0].mxu0
    %2078 = vmatprep.mubr.bf16.mxu0 %v1790
    %2079 = vmatmul.mubr.bf16.gmra.mrb[0].mxu0 %v1789
    %v2080 = vpop.f32.mrb[0].mxu0
    %v2081 = vadd.f32 %v1828, %v2080
    %v2082 = vpop.f32.mrb[0].mxu0
    %v2083 = vpop.f32.mrb[0].mxu0
    %v2084 = vadd.f32 %v1828, %v2083
    %v2085 = vpop.f32.mrb[0].mxu0
    %2086 = vdwg.mxu0
    %v2087 = vpack.c.bf16 %v1964, %v1961
    %v2088 = vpack.c.bf16 %v1972, %v1969
    %v2089 = vpack.c.bf16 %v1980, %v1977
    %v2090 = vpack.c.bf16 %v1988, %v1985
    %v2091 = vpack.c.bf16 %v1996, %v1993
    %v2092 = vpack.c.bf16 %v2004, %v2001
    %v2093 = vpack.c.bf16 %v2012, %v2009
    %v2094 = vpack.c.bf16 %v2020, %v2017
    %v2095 = vpack.c.bf16 %v2028, %v2025
    %v2096 = vpack.c.bf16 %v2036, %v2033
    %v2097 = vpack.c.bf16 %v2044, %v2041
    %v2098 = vpack.c.bf16 %v2052, %v2049
    %v2099 = vpack.c.bf16 %v2060, %v2057
    %v2100 = vpack.c.bf16 %v2068, %v2065
    %v2101 = vpack.c.bf16 %v2076, %v2073
    %v2102 = vpack.c.bf16 %v2084, %v2081
    %v2119 = vunpack.c.l.b16 %v2087
    %v2120 = vunpack.c.h.b16 %v2087
    %v2121 = vunpack.c.l.b16 %v2088
    %v2122 = vunpack.c.h.b16 %v2088
    %v2123 = vunpack.c.l.b16 %v2089
    %v2124 = vunpack.c.h.b16 %v2089
    %v2125 = vunpack.c.l.b16 %v2090
    %v2126 = vunpack.c.h.b16 %v2090
    %v2127 = vunpack.c.l.b16 %v2091
    %v2128 = vunpack.c.h.b16 %v2091
    %v2129 = vunpack.c.l.b16 %v2092
    %v2130 = vunpack.c.h.b16 %v2092
    %v2131 = vunpack.c.l.b16 %v2093
    %v2132 = vunpack.c.h.b16 %v2093
    %v2133 = vunpack.c.l.b16 %v2094
    %v2134 = vunpack.c.h.b16 %v2094
    %v2135 = vunpack.c.l.b16 %v2095
    %v2136 = vunpack.c.h.b16 %v2095
    %v2137 = vunpack.c.l.b16 %v2096
    %v2138 = vunpack.c.h.b16 %v2096
    %v2139 = vunpack.c.l.b16 %v2097
    %v2140 = vunpack.c.h.b16 %v2097
    %v2141 = vunpack.c.l.b16 %v2098
    %v2142 = vunpack.c.h.b16 %v2098
    %v2143 = vunpack.c.l.b16 %v2099
    %v2144 = vunpack.c.h.b16 %v2099
    %v2145 = vunpack.c.l.b16 %v2100
    %v2146 = vunpack.c.h.b16 %v2100
    %v2147 = vunpack.c.l.b16 %v2101
    %v2148 = vunpack.c.h.b16 %v2101
    %v2149 = vunpack.c.l.b16 %v2102
    %v2150 = vunpack.c.h.b16 %v2102
    %v2151 = vpack.c.b16 %v2119, %v2119
    %v2152 = vpack.c.b16 %v2120, %v2120
    %v2153 = vpack.c.b16 %v2121, %v2121
    %v2154 = vpack.c.b16 %v2122, %v2122
    %v2155 = vpack.c.b16 %v2123, %v2123
    %v2156 = vpack.c.b16 %v2124, %v2124
    %v2157 = vpack.c.b16 %v2125, %v2125
    %v2158 = vpack.c.b16 %v2126, %v2126
    %v2159 = vpack.c.b16 %v2127, %v2127
    %v2160 = vpack.c.b16 %v2128, %v2128
    %v2161 = vpack.c.b16 %v2129, %v2129
    %v2162 = vpack.c.b16 %v2130, %v2130
    %v2163 = vpack.c.b16 %v2131, %v2131
    %v2164 = vpack.c.b16 %v2132, %v2132
    %v2165 = vpack.c.b16 %v2133, %v2133
    %v2166 = vpack.c.b16 %v2134, %v2134
    %v2167 = vpack.c.b16 %v2135, %v2135
    %v2168 = vpack.c.b16 %v2136, %v2136
    %v2169 = vpack.c.b16 %v2137, %v2137
    %v2170 = vpack.c.b16 %v2138, %v2138
    %v2171 = vpack.c.b16 %v2139, %v2139
    %v2172 = vpack.c.b16 %v2140, %v2140
    %v2173 = vpack.c.b16 %v2141, %v2141
    %v2174 = vpack.c.b16 %v2142, %v2142
    %v2175 = vpack.c.b16 %v2143, %v2143
    %v2176 = vpack.c.b16 %v2144, %v2144
    %v2177 = vpack.c.b16 %v2145, %v2145
    %v2178 = vpack.c.b16 %v2146, %v2146
    %v2179 = vpack.c.b16 %v2147, %v2147
    %v2180 = vpack.c.b16 %v2148, %v2148
    %v2181 = vpack.c.b16 %v2149, %v2149
    %v2182 = vpack.c.b16 %v2150, %v2150
    %2215 = vst [vmem:[#allocation7] sm:$0xf] %v2151
    %2216 = vst [vmem:[#allocation7 + $0x4] sm:$0xf] %v2152
    %2217 = vst [vmem:[#allocation7 + $0x8] sm:$0xf] %v2153
    %2218 = vst [vmem:[#allocation7 + $0xc] sm:$0xf] %v2154
    %2219 = vst [vmem:[#allocation7 + $0x10] sm:$0xf] %v2155
    %2220 = vst [vmem:[#allocation7 + $0x14] sm:$0xf] %v2156
    %2221 = vst [vmem:[#allocation7 + $0x18] sm:$0xf] %v2157
    %2222 = vst [vmem:[#allocation7 + $0x1c] sm:$0xf] %v2158
    %2223 = vst [vmem:[#allocation7 + $0x20] sm:$0xf] %v2159
    %2224 = vst [vmem:[#allocation7 + $0x24] sm:$0xf] %v2160
    %2225 = vst [vmem:[#allocation7 + $0x28] sm:$0xf] %v2161
    %2226 = vst [vmem:[#allocation7 + $0x2c] sm:$0xf] %v2162
    %2227 = vst [vmem:[#allocation7 + $0x30] sm:$0xf] %v2163
    %2228 = vst [vmem:[#allocation7 + $0x34] sm:$0xf] %v2164
    %2229 = vst [vmem:[#allocation7 + $0x38] sm:$0xf] %v2165
    %2230 = vst [vmem:[#allocation7 + $0x3c] sm:$0xf] %v2166
    %2231 = vst [vmem:[#allocation7 + $0x40] sm:$0xf] %v2167
    %2232 = vst [vmem:[#allocation7 + $0x44] sm:$0xf] %v2168
    %2233 = vst [vmem:[#allocation7 + $0x48] sm:$0xf] %v2169
    %2234 = vst [vmem:[#allocation7 + $0x4c] sm:$0xf] %v2170
    %2235 = vst [vmem:[#allocation7 + $0x50] sm:$0xf] %v2171
    %2236 = vst [vmem:[#allocation7 + $0x54] sm:$0xf] %v2172
    %2237 = vst [vmem:[#allocation7 + $0x58] sm:$0xf] %v2173
    %2238 = vst [vmem:[#allocation7 + $0x5c] sm:$0xf] %v2174
    %2239 = vst [vmem:[#allocation7 + $0x60] sm:$0xf] %v2175
    %2240 = vst [vmem:[#allocation7 + $0x64] sm:$0xf] %v2176
    %2241 = vst [vmem:[#allocation7 + $0x68] sm:$0xf] %v2177
    %2242 = vst [vmem:[#allocation7 + $0x6c] sm:$0xf] %v2178
    %2243 = vst [vmem:[#allocation7 + $0x70] sm:$0xf] %v2179
    %2244 = vst [vmem:[#allocation7 + $0x74] sm:$0xf] %v2180
    %2245 = vst [vmem:[#allocation7 + $0x78] sm:$0xf] %v2181
    %2246 = vst [vmem:[#allocation7 + $0x7c] sm:$0xf] %v2182
    // Predicated region
    $region46: #{tpu_custom_call.1} parent=1 // pred_check
      _
    $region47: #{tpu_custom_call.1} parent=1 // pred_check_branch
      %2248 = sbr.rel (0) target = $region49
    $region48: #{tpu_custom_call.1} parent=1 // pred_region
      %s2250 = ssub.s32 2048, 2048
      %2251 = vsyncadd [#allocation4], %s2250
      %s2252 = sshll.u32 [#allocation7], 4
      %s2253 = int_to_ptr.vmem [resolvable:$true] %s2252
      %2258 = dma.vmem_to_hbm [thread:$0]  %s2253, 2048, %s9, [#allocation4], 64, 64, 4
    $region49: #{tpu_custom_call.1} parent=1 // pred_fallthru
      _
    // Predicated region
    $region50: #{tpu_custom_call.1} parent=1 // pred_check
      _
    $region51: #{tpu_custom_call.1} parent=1 // pred_check_branch
      %2260 = sbr.rel (0) target = $region53
    $region52: #{tpu_custom_call.1} parent=1 // pred_region
      %2261 = dma.done [#allocation4], 2048
    $region53: #{tpu_custom_call.1} parent=1 // pred_fallthru
      _
    %2262 = vsyncpa [#allocation3], 1
    %2263 = vsyncpa [#allocation6], 1
    %2264 = vsyncpa [#allocation4], 1

</llo_original>
